<compile_context>
chip_gen: v5e
topology: v5e:2x2
jax: 0.10.0
libtpu: 0.0.40
codegen_flags: <defaults>
</compile_context>

<pallas_src>
import jax
import jax.numpy as jnp
from jax import lax
from jax.experimental import pallas as pl
from jax.experimental.pallas import tpu as pltpu


def _pe_se_kernel(x_ref, pe_ref, alpha_ref, o_ref):
    # x_ref    : (1, C, L)  one batch, channel-major (flattened NCHW)
    # pe_ref   : (C, L)     positional encodings, shared across batches (resident)
    # alpha_ref: (1, 1)     se_alpha scalar in SMEM
    # o_ref    : (1, C, TQ) output tile (channel-major / NCHW layout, lane-dense)
    l = x_ref.shape[2]
    tq = o_ref.shape[2]

    x_full = x_ref[0]                                    # (C, L)
    if tq == l:                                          # single-query-tile path (static)
        x_q = x_full                                     # (C, TQ)
        pe_q = pe_ref[...]                               # (C, TQ)
    else:                                                # q-tiled path (large L)
        q0 = pl.multiple_of(pl.program_id(1) * tq, tq)
        x_q = x_ref[0, :, pl.ds(q0, tq)]                 # (C, TQ)
        pe_q = pe_ref[:, pl.ds(q0, tq)]                  # (C, TQ)

    # scores[i, j] = sum_c x_q[c, i] * x_full[c, j]  ->  (TQ, L)
    # One small XLU transpose puts this matmul in natural (lhs rows x rhs) MXU form.
    x_q_t = x_q.T                                        # (TQ, C)
    s = jnp.dot(x_q_t, x_full, preferred_element_type=jnp.float32)   # (TQ, L) f32

    # Numerically stable row softmax over the full key axis.  The row-sum
    # reciprocal is computed once per query (TQ values, EUP) and applied with a
    # single VPU multiply instead of TQ*L f32 divisions.
    s_max = jnp.max(s, axis=-1, keepdims=True)           # (TQ, 1)
    p = jnp.exp(s - s_max)                               # (TQ, L)
    inv_l = pl.reciprocal(jnp.sum(p, axis=-1, keepdims=True))   # (TQ, 1), exact
    p = p * inv_l                                        # normalized probabilities

    # se_t[c, i] = sum_j x_full[c, j] * p[i, j]  ->  (C, TQ)
    # (rhs-transposed contraction: the MXU latches the transposed RHS directly)
    se_t = lax.dot_general(x_full, p, (((1,), (1,)), ((), ())),
                           preferred_element_type=jnp.float32)

    alpha = alpha_ref[0, 0]
    o_ref[0] = (x_q + pe_q + alpha * se_t).astype(o_ref.dtype)


def _pick_tq(L: int) -> int:
    # Tile the query axis only when the (TQ, L) f32 score tile would get large;
    # small cases stay on the static single-tile path.  TQ=256 keeps score tile
    # + resident x/pe blocks comfortably inside v7x's 64 MiB VMEM at max_len=4096.
    if L > 512:
        for cand in (256, 128):
            if L % cand == 0:
                return cand
    return L


def _pe_se_call(x_bcl, pe, se_alpha, *, tq=None):
    """x_bcl: (B, C, L) channel-major, pe: (1, max_len, C), se_alpha: scalar/(1,)."""
    B, C, L = x_bcl.shape
    assert pe.shape[0] == 1 and pe.shape[2] == C, pe.shape
    # The module adds pe without slicing, so the sequence length must equal max_len.
    assert pe.shape[1] == L, "sequence length (h*w) must equal max_len"

    pe_t = jnp.transpose(pe[0])                            # (C, L), batch-invariant, done once
    alpha = jnp.asarray(se_alpha, jnp.float32).reshape(1, 1)

    if tq is None:
        tq = _pick_tq(L)
    assert L % tq == 0
    grid = (B, L // tq)

    cost = pl.CostEstimate(
        flops=4 * B * C * L * L,                # two (L x L x C) matmuls per batch
        transcendentals=B * L * L,              # exp in the softmax
        bytes_accessed=4 * (2 * B * C * L + C * L),
    )

    return pl.pallas_call(
        _pe_se_kernel,
        out_shape=jax.ShapeDtypeStruct((B, C, L), x_bcl.dtype),
        grid_spec=pltpu.PrefetchScalarGridSpec(
            num_scalar_prefetch=0,
            grid=grid,
            in_specs=[
                pl.BlockSpec((1, C, L), lambda b, q: (b, 0, 0)),   # x: full sequence per batch
                pl.BlockSpec((C, L), lambda b, q: (0, 0)),         # pe: shared, constant block
                pl.BlockSpec(memory_space=pltpu.MemorySpace.SMEM), # se_alpha scalar
            ],
            out_specs=pl.BlockSpec((1, C, tq), lambda b, q: (b, 0, q)),
        ),
        compiler_params=pltpu.CompilerParams(
            dimension_semantics=("parallel", "parallel"),
            # Headroom for large max_len blocks; capped at v7x's 64 MiB physical VMEM.
            vmem_limit_bytes=64 * 1024 * 1024,
        ),
        cost_estimate=cost,
    )(x_bcl, pe_t, alpha)


def single_positional_semantic_embedding(x, pe, se_alpha):
    """Forward matching the PyTorch module.

    x: (B, C, H, W) NCHW (4-D path) or (B, L, C) (3-D path).
    pe: (1, max_len, d_model), se_alpha: scalar / shape-(1,) parameter.
    """
    if x.ndim == 4:
        B, C, H, W = x.shape
        x_bcl = x.reshape(B, C, H * W)        # 'b c h w -> b c (h w)': free, no transpose
        y = _pe_se_call(x_bcl, pe, se_alpha)  # (B, C, L), already channel-major
        return y.reshape(B, C, H, W)          # free reshape back to NCHW
    else:
        # Rare 3-D path: bring to channel-major for the kernel and back.
        x_bcl = jnp.transpose(x, (0, 2, 1))
        y = _pe_se_call(x_bcl, pe, se_alpha)
        return jnp.transpose(y, (0, 2, 1))


if __name__ == "__main__":
    # Small config consistent with the module: d_model = 128, spatial 16x16
    # -> max_len = 256, batch = 2.
    B, C, H, W = 2, 128, 16, 16
    d_model, max_len = C, H * W

    key = jax.random.PRNGKey(0)
    kx, kpe = jax.random.split(key, 2)
    x = jax.random.normal(kx, (B, C, H, W), dtype=jnp.float32)
    pe = jax.random.normal(kpe, (1, max_len, d_model), dtype=jnp.float32)
    se_alpha = jnp.array([0.5], dtype=jnp.float32)  # synthetic value (module init is 1.0)

    fwd = jax.jit(single_positional_semantic_embedding)
    out = jax.block_until_ready(fwd(x, pe, se_alpha))
    assert out.shape == (B, C, H, W), out.shape

    # Plain-JAX reference (mirrors the PyTorch forward in (B, L, C) layout).
    hp = lax.Precision.HIGHEST
    x_bld = jnp.transpose(x.reshape(B, C, H * W), (0, 2, 1))           # b c h w -> b (h w) c
    scores = jnp.einsum('bic,bjc->bij', x_bld, x_bld, precision=hp)    # x @ x^T
    probs = jax.nn.softmax(scores, axis=-1)
    se = jnp.einsum('bij,bjc->bic', probs, x_bld, precision=hp)        # P @ x
    ref_bld = x_bld + pe + se_alpha[0] * se
    ref = jnp.transpose(ref_bld, (0, 2, 1)).reshape(B, C, H, W)        # b (h w) c -> b c h w

    max_err = float(jnp.max(jnp.abs(out - ref)))
    assert jnp.allclose(out, ref, atol=2e-3, rtol=2e-3), max_err

    print("KERNEL_OK")
</pallas_src>

<mosaic_0001>
module attributes {stable_mosaic.version = 11 : i64} {
  func.func @_pe_se_kernel(%arg0: i32, %arg1: i32, %arg2: memref<1x128x256xf32, #tpu.memory_space<vmem>>, %arg3: memref<128x256xf32, #tpu.memory_space<vmem>>, %arg4: memref<1x1xf32, #tpu.memory_space<smem>>, %arg5: memref<1x128x256xf32, #tpu.memory_space<vmem>>) attributes {dimension_semantics = [#tpu.dimension_semantics<parallel>, #tpu.dimension_semantics<parallel>], iteration_bounds = array<i64: 2, 1>, scalar_prefetch = 0 : i64, scratch_operands = 0 : i64, tpu.core_type = #tpu.core_type<tc>, window_params = [{transform_indices = @transform_0, window_bounds = array<i64: 1, 128, 256>}, {pipeline_mode = #tpu.pipeline_mode<synchronous>, transform_indices = @transform_1, window_bounds = array<i64: 128, 256>}, {transform_indices = @transform_2, window_bounds = array<i64: 1, 1>}, {transform_indices = @transform_3, window_bounds = array<i64: 1, 128, 256>}]} {
    %c0 = arith.constant 0 : index
    %c0_0 = arith.constant 0 : index
    %c0_1 = arith.constant 0 : index
    %0 = vector.load %arg2[%c0, %c0_0, %c0_1] : memref<1x128x256xf32, #tpu.memory_space<vmem>>, vector<1x128x256xf32>
    %1 = vector.shape_cast %0 : vector<1x128x256xf32> to vector<128x256xf32>
    %c0_2 = arith.constant 0 : index
    %c0_3 = arith.constant 0 : index
    %2 = vector.load %arg3[%c0_2, %c0_3] : memref<128x256xf32, #tpu.memory_space<vmem>>, vector<128x256xf32>
    %3 = tpu.transpose %1, [1, 0] : vector<128x256xf32> -> vector<256x128xf32>
    %cst = arith.constant dense<0.000000e+00> : vector<256x256xf32>
    %4 = tpu.matmul %3, %1, %cst {dimension_numbers = #tpu.dot_dimension_numbers<[1], [0], [0], [1], [0, 0, 1, 1], [], []>} : vector<256x128xf32>, vector<128x256xf32>, vector<256x256xf32> -> vector<256x256xf32>
    %cst_4 = arith.constant dense<0xFF800000> : vector<256xf32>
    %5 = vector.multi_reduction <maximumf>, %4, %cst_4 [1] : vector<256x256xf32> to vector<256xf32>
    %6 = vector.shape_cast %5 : vector<256xf32> to vector<256x1xf32>
    %7 = vector.broadcast %6 : vector<256x1xf32> to vector<256x256xf32>
    %8 = arith.subf %4, %7 : vector<256x256xf32>
    %9 = math.exp %8 : vector<256x256xf32>
    %cst_5 = arith.constant dense<0.000000e+00> : vector<256xf32>
    %10 = vector.multi_reduction <add>, %9, %cst_5 [1] : vector<256x256xf32> to vector<256xf32>
    %11 = vector.shape_cast %10 : vector<256xf32> to vector<256x1xf32>
    %12 = tpu.reciprocal %11 : vector<256x1xf32> -> vector<256x1xf32>
    %13 = vector.broadcast %12 : vector<256x1xf32> to vector<256x256xf32>
    %14 = arith.mulf %9, %13 : vector<256x256xf32>
    %cst_6 = arith.constant dense<0.000000e+00> : vector<128x256xf32>
    %15 = tpu.matmul %1, %14, %cst_6 {dimension_numbers = #tpu.dot_dimension_numbers<[1], [1], [0], [0], [0, 0, 1, 0], [], []>} : vector<128x256xf32>, vector<256x256xf32>, vector<128x256xf32> -> vector<128x256xf32>
    %c0_7 = arith.constant 0 : index
    %c0_8 = arith.constant 0 : index
    %16 = memref.load %arg4[%c0_7, %c0_8] : memref<1x1xf32, #tpu.memory_space<smem>>
    %17 = arith.addf %1, %2 : vector<128x256xf32>
    %18 = vector.broadcast %16 : f32 to vector<128x256xf32>
    %19 = arith.mulf %18, %15 : vector<128x256xf32>
    %20 = arith.addf %17, %19 : vector<128x256xf32>
    %c0_9 = arith.constant 0 : index
    %c0_10 = arith.constant 0 : index
    %c0_11 = arith.constant 0 : index
    %21 = vector.load %arg5[%c0_9, %c0_10, %c0_11] : memref<1x128x256xf32, #tpu.memory_space<vmem>>, vector<1x128x256xf32>
    %22 = vector.shape_cast %21 : vector<1x128x256xf32> to vector<128x256xf32>
    %23 = vector.shape_cast %20 : vector<128x256xf32> to vector<1x128x256xf32>
    tpu.vector_store %arg5[%c0_9, %c0_10, %c0_11], %23 {strides = array<i32>} : memref<1x128x256xf32, #tpu.memory_space<vmem>>, vector<1x128x256xf32>,
    return
  }
  func.func @transform_0(%arg0: i32, %arg1: i32) -> (i32, i32, i32) {
    %c0_i32 = arith.constant 0 : i32
    %c0_i32_0 = arith.constant 0 : i32
    %c0_i32_1 = arith.constant 0 : i32
    return %arg0, %c0_i32, %c0_i32_0 : i32, i32, i32
  }
  func.func @transform_1(%arg0: i32, %arg1: i32) -> (i32, i32) {
    %c0_i32 = arith.constant 0 : i32
    %c0_i32_0 = arith.constant 0 : i32
    %c0_i32_1 = arith.constant 0 : i32
    return %c0_i32, %c0_i32_0 : i32, i32
  }
  func.func @transform_2(%arg0: i32, %arg1: i32) -> (i32, i32) {
    %c0_i32 = arith.constant 0 : i32
    %c0_i32_0 = arith.constant 0 : i32
    %c0_i32_1 = arith.constant 0 : i32
    return %c0_i32, %c0_i32_0 : i32, i32
  }
  func.func @transform_3(%arg0: i32, %arg1: i32) -> (i32, i32, i32) {
    %c0_i32 = arith.constant 0 : i32
    %c0_i32_0 = arith.constant 0 : i32
    return %arg0, %c0_i32, %arg1 : i32, i32, i32
  }
}

</mosaic_0001>

<llo_original>
// kernel: single_positional_semantic_embedding.1
$region0: #{single_positional_semantic_embedding.1}
  #allocation0 [shape = 'u32[]', space=smem, size = 0x4, offset = 0x4, fixed_abs, tag = 'smem constant byte address 0x4 - core index']
  #allocation1 [shape = 'u32[72,128]{1,0:T(1,128)}', space=vmem, size = 0x9000, scoped, tag = 'internal scratch']
  #allocation2 [shape = 'f32[1,1]{1,0:T(1,128)S(6)}', space=smem, size = 0x200, scoped, tag = 'scoped memory for single_positional_semantic_embedding.1']
  %s0 = inlined_call_operand.vmem [shape: f32[2,128,256], index: 0, kind: input, shape index: {}]
  %s1 = inlined_call_operand.vmem [shape: f32[128,256], index: 1, kind: input, shape index: {}]
  %s2 = inlined_call_operand.<no memory space> [shape: f32[1,1], index: 2, kind: input, shape index: {}]
  %s3 = inlined_call_operand.vmem [shape: f32[2,128,256], index: 3, kind: output, shape index: {}]
  %s4 = sld [smem:[#allocation0]]
  $region45: #{single_positional_semantic_embedding.1} parent=0
    _
  %s6 = ssub.s32 1, %s4
  %s7 = scalar_select 0, %s6, %s4
  %8 = sst [smem:[#allocation2]] %s2
  loop: start=0, step=1, limit=4
  $region2: #{single_positional_semantic_embedding.1} parent=0 // loop_pre_header
    _
  $region3: #{single_positional_semantic_embedding.1} parent=0 // loop_header
    %s10 = sphi 0, %s14
    %p11 = scmp.ge.s32.totalorder %s10, 4
    %s17 = sphi 0, %s29
    %s18 = sphi 0, %s25
    %s19 = sphi 0, %s17
    %s20 = sphi 0, %s18
    %s21 = sphi 0, %s19
    %s22 = sphi 0, %s20
    %s32 = sphi 0, %s34
    %s35 = sphi 0, %s32
    %s36 = sphi 0, %s35
    %s52 = sphi 0, %s36
    %s56 = sphi 0, %s56
    %s58 = sphi 0, %s56
    %s59 = sphi 0, %s58
    %s73 = sphi 0, %s59
    %s77 = sphi 0, %s77
    %s79 = sphi 0, %s77
    %s80 = sphi 0, %s79
    %s94 = sphi 0, %s80
    %s102 = sphi 0, %s104
    %s105 = sphi 0, %s102
    %s106 = sphi 0, %s105
    %s122 = sphi 0, %s106
  $region4: #{single_positional_semantic_embedding.1} parent=0 // loop_header_branch
    %13 = sbr.rel (%p11) target = $region8
  $region5: #{single_positional_semantic_embedding.1} parent=0 // loop_body
    %s15 = ssub.s32 %s10, 1
    %s16 = ssub.s32 %s10, 2
    %s23 = sadd.s32 1, %s18
    %p24 = scmp.ge.s32.totalorder %s23, 1
    %s25 = scalar_select %p24, 0, %s23
    %s26 = sadd.s32 1, %s17
    %s27 = scalar_select %p24, %s26, %s17
    %p28 = scmp.ge.s32.totalorder %s27, 2
    %s29 = scalar_select %p28, 0, %s27
    %s30 = ssub.s32 %s17, %s29
    %p31 = scmp.eq.s32.totalorder %s30, 0
    %s33 = sadd.s32 %s32, 1
    %s34 = scalar_select %p31, %s32, %s33
    %p37 = pneg %p31
    %p38 = scmp.eq.s32.totalorder %s10, 1
    %p39 = por %p37, %p38
    %p40 = scmp.ne.s32.totalorder %s32, %s35
    %p41 = scmp.eq.s32.totalorder %s10, 0
    %p42 = por %p40, %p41
    %p43 = scmp.ne.s32.totalorder %s32, %s35
    %p44 = scmp.eq.s32.totalorder %s15, 1
    %p45 = por %p43, %p44
    %p46 = scmp.ne.s32.totalorder %s35, %s36
    %p47 = scmp.eq.s32.totalorder %s15, 0
    %p48 = por %p46, %p47
    %p49 = scmp.ne.s32.totalorder %s35, %s36
    %p50 = scmp.eq.s32.totalorder %s16, 1
    %p51 = por %p49, %p50
    %p53 = scmp.ne.s32.totalorder %s36, %s52
    %p54 = scmp.eq.s32.totalorder %s16, 0
    %p55 = por %p53, %p54
    %s57 = sadd.s32 %s56, 1
    %p60 = scmp.eq.s32.totalorder %s10, 1
    %p61 = scmp.ne.s32.totalorder %s56, %s58
    %p62 = scmp.eq.s32.totalorder %s10, 0
    %p63 = por %p61, %p62
    %p64 = scmp.ne.s32.totalorder %s56, %s58
    %p65 = scmp.eq.s32.totalorder %s15, 1
    %p66 = por %p64, %p65
    %p67 = scmp.ne.s32.totalorder %s58, %s59
    %p68 = scmp.eq.s32.totalorder %s15, 0
    %p69 = por %p67, %p68
    %p70 = scmp.ne.s32.totalorder %s58, %s59
    %p71 = scmp.eq.s32.totalorder %s16, 1
    %p72 = por %p70, %p71
    %p74 = scmp.ne.s32.totalorder %s59, %s73
    %p75 = scmp.eq.s32.totalorder %s16, 0
    %p76 = por %p74, %p75
    %s78 = sadd.s32 %s77, 1
    %p81 = scmp.eq.s32.totalorder %s10, 1
    %p82 = scmp.ne.s32.totalorder %s77, %s79
    %p83 = scmp.eq.s32.totalorder %s10, 0
    %p84 = por %p82, %p83
    %p85 = scmp.ne.s32.totalorder %s77, %s79
    %p86 = scmp.eq.s32.totalorder %s15, 1
    %p87 = por %p85, %p86
    %p88 = scmp.ne.s32.totalorder %s79, %s80
    %p89 = scmp.eq.s32.totalorder %s15, 0
    %p90 = por %p88, %p89
    %p91 = scmp.ne.s32.totalorder %s79, %s80
    %p92 = scmp.eq.s32.totalorder %s16, 1
    %p93 = por %p91, %p92
    %p95 = scmp.ne.s32.totalorder %s80, %s94
    %p96 = scmp.eq.s32.totalorder %s16, 0
    %p97 = por %p95, %p96
    %s98 = ssub.s32 %s17, %s29
    %s99 = ssub.s32 %s18, %s25
    %s100 = sor.u32 %s98, %s99
    %p101 = scmp.eq.s32.totalorder %s100, 0
    %s103 = sadd.s32 %s102, 1
    %s104 = scalar_select %p101, %s102, %s103
    %p107 = pneg %p101
    %p108 = scmp.eq.s32.totalorder %s10, 1
    %p109 = por %p107, %p108
    %p110 = scmp.ne.s32.totalorder %s102, %s105
    %p111 = scmp.eq.s32.totalorder %s10, 0
    %p112 = por %p110, %p111
    %p113 = scmp.ne.s32.totalorder %s102, %s105
    %p114 = scmp.eq.s32.totalorder %s15, 1
    %p115 = por %p113, %p114
    %p116 = scmp.ne.s32.totalorder %s105, %s106
    %p117 = scmp.eq.s32.totalorder %s15, 0
    %p118 = por %p116, %p117
    %p119 = scmp.ne.s32.totalorder %s105, %s106
    %p120 = scmp.eq.s32.totalorder %s16, 1
    %p121 = por %p119, %p120
    %p123 = scmp.ne.s32.totalorder %s106, %s122
    %p124 = scmp.eq.s32.totalorder %s16, 0
    %p125 = por %p123, %p124
    %p126 = scmp.le.s32.totalorder 1, %s10
    %p127 = scmp.lt.s32.totalorder %s10, 3
    %p128 = pnand %p126, %p127
    %p129 = pneg %p128
    // Predicated region
    $region9: #{single_positional_semantic_embedding.1} parent=5 // pred_check
      _
    $region10: #{single_positional_semantic_embedding.1} parent=5 // pred_check_branch
      %131 = sbr.rel (%p128) target = $region12
    $region11: #{single_positional_semantic_embedding.1} parent=5 // pred_region
      %s132 = ssub.s32 %s10, 1
      // Predicated region
      $region13: #{single_positional_semantic_embedding.1} parent=11 // pred_check
        %p133 = pneg %p69
      $region14: #{single_positional_semantic_embedding.1} parent=11 // pred_check_branch
        %135 = sbr.rel (%p133) target = $region16
      $region15: #{single_positional_semantic_embedding.1} parent=11 // pred_region
        _
      $region16: #{single_positional_semantic_embedding.1} parent=11 // pred_fallthru
        _
      // Predicated region
      $region17: #{single_positional_semantic_embedding.1} parent=11 // pred_check
        %p136 = pneg %p90
      $region18: #{single_positional_semantic_embedding.1} parent=11 // pred_check_branch
        %138 = sbr.rel (%p136) target = $region20
      $region19: #{single_positional_semantic_embedding.1} parent=11 // pred_region
        _
      $region20: #{single_positional_semantic_embedding.1} parent=11 // pred_fallthru
        _
    $region12: #{single_positional_semantic_embedding.1} parent=5 // pred_fallthru
      _
    %p139 = scmp.lt.s32.totalorder %s10, 2
    // Predicated region
    $region21: #{single_positional_semantic_embedding.1} parent=5 // pred_check
      %p140 = pneg %p139
    $region22: #{single_positional_semantic_embedding.1} parent=5 // pred_check_branch
      %142 = sbr.rel (%p140) target = $region24
    $region23: #{single_positional_semantic_embedding.1} parent=5 // pred_region
      // Predicated region
      $region25: #{single_positional_semantic_embedding.1} parent=23 // pred_check
        %p143 = pneg %p42
      $region26: #{single_positional_semantic_embedding.1} parent=23 // pred_check_branch
        %145 = sbr.rel (%p143) target = $region28
      $region27: #{single_positional_semantic_embedding.1} parent=23 // pred_region
        %p146 = scmp.lt.s32.totalorder %s17, 1
        %s147 = scalar_select %p146, %s17, 1
        %s148 = smul.addr %s147, 32
        %s149 = smul.addr %s148, 8
        %s150 = scalar_lea.vmem %s0, %s149
      $region28: #{single_positional_semantic_embedding.1} parent=23 // pred_fallthru
        _
    $region24: #{single_positional_semantic_embedding.1} parent=5 // pred_fallthru
      _
    %p151 = scmp.le.s32.totalorder 1, %s10
    %p152 = scmp.lt.s32.totalorder %s10, 3
    %p153 = pnand %p151, %p152
    %p154 = pneg %p153
    // Predicated region
    $region29: #{single_positional_semantic_embedding.1} parent=5 // pred_check
      _
    $region30: #{single_positional_semantic_embedding.1} parent=5 // pred_check_branch
      %156 = sbr.rel (%p153) target = $region32
    $region31: #{single_positional_semantic_embedding.1} parent=5 // pred_region
      %s157 = ssub.s32 %s10, 1
      %p158 = scmp.lt.s32.totalorder %s19, 1
      %s159 = scalar_select %p158, %s19, 1
      %s160 = smul.addr %s159, 32
      %s161 = smul.addr %s160, 8
      %s162 = scalar_lea.vmem %s0, %s161
      %p163 = pneg %p48
      %p164 = pneg %p45
      %p165 = pneg %p69
      %p166 = pneg %p66
      %p167 = pneg %p90
      %p168 = pneg %p87
      %p169 = pneg %p118
      %p170 = pneg %p115
      %s171 = smul.u32 2, %s20
      %p172 = scmp.lt.s32.totalorder %s19, 1
      %s173 = scalar_select %p172, %s19, 1
      %p174 = scmp.lt.s32.totalorder %s171, 1
      %s175 = scalar_select %p174, %s171, 1
      %s176 = smul.addr %s173, 32
      %s177 = sadd.s32 %s175, %s176
      %s178 = smul.addr %s177, 8
      %s179 = scalar_lea.vmem %s3, %s178
      %p180 = scmp.lt.s32.totalorder %s19, 1
      %s181 = scalar_select %p180, %s19, 1
      %s182 = smul.addr %s181, 32
      %s183 = smul.addr %s182, 8
      %s184 = scalar_lea.vmem %s0, %s183
      %s185 = smul.u32 2, %s20
      %p186 = scmp.lt.s32.totalorder %s19, 1
      %s187 = scalar_select %p186, %s19, 1
      %p188 = scmp.lt.s32.totalorder %s185, 1
      %s189 = scalar_select %p188, %s185, 1
      %s190 = smul.addr %s187, 32
      %s191 = sadd.s32 %s189, %s190
      %s192 = smul.addr %s191, 8
      %s193 = scalar_lea.vmem %s3, %s192
      %s194 = smul.u32 2, %s20
      %v195 = vld [vmem:[%s184] sm:$0xff]
      %v196 = vld [vmem:[%s184 + $0x8] sm:$0xff]
      %v197 = vld [vmem:[%s184 + $0x10] sm:$0xff]
      %v198 = vld [vmem:[%s184 + $0x18] sm:$0xff]
      %v199 = vld [vmem:[%s184 + $0x20] sm:$0xff]
      %v200 = vld [vmem:[%s184 + $0x28] sm:$0xff]
      %v201 = vld [vmem:[%s184 + $0x30] sm:$0xff]
      %v202 = vld [vmem:[%s184 + $0x38] sm:$0xff]
      %v203 = vld [vmem:[%s184 + $0x40] sm:$0xff]
      %v204 = vld [vmem:[%s184 + $0x48] sm:$0xff]
      %v205 = vld [vmem:[%s184 + $0x50] sm:$0xff]
      %v206 = vld [vmem:[%s184 + $0x58] sm:$0xff]
      %v207 = vld [vmem:[%s184 + $0x60] sm:$0xff]
      %v208 = vld [vmem:[%s184 + $0x68] sm:$0xff]
      %v209 = vld [vmem:[%s184 + $0x70] sm:$0xff]
      %v210 = vld [vmem:[%s184 + $0x78] sm:$0xff]
      %v211 = vld [vmem:[%s184 + $0x80] sm:$0xff]
      %v212 = vld [vmem:[%s184 + $0x88] sm:$0xff]
      %v213 = vld [vmem:[%s184 + $0x90] sm:$0xff]
      %v214 = vld [vmem:[%s184 + $0x98] sm:$0xff]
      %v215 = vld [vmem:[%s184 + $0xa0] sm:$0xff]
      %v216 = vld [vmem:[%s184 + $0xa8] sm:$0xff]
      %v217 = vld [vmem:[%s184 + $0xb0] sm:$0xff]
      %v218 = vld [vmem:[%s184 + $0xb8] sm:$0xff]
      %v219 = vld [vmem:[%s184 + $0xc0] sm:$0xff]
      %v220 = vld [vmem:[%s184 + $0xc8] sm:$0xff]
      %v221 = vld [vmem:[%s184 + $0xd0] sm:$0xff]
      %v222 = vld [vmem:[%s184 + $0xd8] sm:$0xff]
      %v223 = vld [vmem:[%s184 + $0xe0] sm:$0xff]
      %v224 = vld [vmem:[%s184 + $0xe8] sm:$0xff]
      %v225 = vld [vmem:[%s184 + $0xf0] sm:$0xff]
      %v226 = vld [vmem:[%s184 + $0xf8] sm:$0xff]
      %v227 = vld [vmem:[%s1] sm:$0xff]
      %v228 = vld [vmem:[%s1 + $0x8] sm:$0xff]
      %v229 = vld [vmem:[%s1 + $0x10] sm:$0xff]
      %v230 = vld [vmem:[%s1 + $0x18] sm:$0xff]
      %v231 = vld [vmem:[%s1 + $0x20] sm:$0xff]
      %v232 = vld [vmem:[%s1 + $0x28] sm:$0xff]
      %v233 = vld [vmem:[%s1 + $0x30] sm:$0xff]
      %v234 = vld [vmem:[%s1 + $0x38] sm:$0xff]
      %v235 = vld [vmem:[%s1 + $0x40] sm:$0xff]
      %v236 = vld [vmem:[%s1 + $0x48] sm:$0xff]
      %v237 = vld [vmem:[%s1 + $0x50] sm:$0xff]
      %v238 = vld [vmem:[%s1 + $0x58] sm:$0xff]
      %v239 = vld [vmem:[%s1 + $0x60] sm:$0xff]
      %v240 = vld [vmem:[%s1 + $0x68] sm:$0xff]
      %v241 = vld [vmem:[%s1 + $0x70] sm:$0xff]
      %v242 = vld [vmem:[%s1 + $0x78] sm:$0xff]
      %v243 = vld [vmem:[%s1 + $0x80] sm:$0xff]
      %v244 = vld [vmem:[%s1 + $0x88] sm:$0xff]
      %v245 = vld [vmem:[%s1 + $0x90] sm:$0xff]
      %v246 = vld [vmem:[%s1 + $0x98] sm:$0xff]
      %v247 = vld [vmem:[%s1 + $0xa0] sm:$0xff]
      %v248 = vld [vmem:[%s1 + $0xa8] sm:$0xff]
      %v249 = vld [vmem:[%s1 + $0xb0] sm:$0xff]
      %v250 = vld [vmem:[%s1 + $0xb8] sm:$0xff]
      %v251 = vld [vmem:[%s1 + $0xc0] sm:$0xff]
      %v252 = vld [vmem:[%s1 + $0xc8] sm:$0xff]
      %v253 = vld [vmem:[%s1 + $0xd0] sm:$0xff]
      %v254 = vld [vmem:[%s1 + $0xd8] sm:$0xff]
      %v255 = vld [vmem:[%s1 + $0xe0] sm:$0xff]
      %v256 = vld [vmem:[%s1 + $0xe8] sm:$0xff]
      %v257 = vld [vmem:[%s1 + $0xf0] sm:$0xff]
      %v258 = vld [vmem:[%s1 + $0xf8] sm:$0xff]
      %259 = vxpose.xlu0.b32.start [1/16] %v195, 128
      %260 = vxpose.xlu0.b32.cont [2/16] %v197, 128
      %261 = vxpose.xlu0.b32.cont [3/16] %v199, 128
      %262 = vxpose.xlu0.b32.cont [4/16] %v201, 128
      %263 = vxpose.xlu0.b32.cont [5/16] %v203, 128
      %264 = vxpose.xlu0.b32.cont [6/16] %v205, 128
      %265 = vxpose.xlu0.b32.cont [7/16] %v207, 128
      %266 = vxpose.xlu0.b32.cont [8/16] %v209, 128
      %267 = vxpose.xlu0.b32.cont [9/16] %v211, 128
      %268 = vxpose.xlu0.b32.cont [10/16] %v213, 128
      %269 = vxpose.xlu0.b32.cont [11/16] %v215, 128
      %270 = vxpose.xlu0.b32.cont [12/16] %v217, 128
      %271 = vxpose.xlu0.b32.cont [13/16] %v219, 128
      %272 = vxpose.xlu0.b32.cont [14/16] %v221, 128
      %273 = vxpose.xlu0.b32.cont [15/16] %v223, 128
      %274 = vxpose.xlu0.b32.end [16/16] %v225, 128
      %v275 = vpop.trf.xlu0
      %v276 = vpop.trf.xlu0
      %v277 = vpop.trf.xlu0
      %v278 = vpop.trf.xlu0
      %v279 = vpop.trf.xlu0
      %v280 = vpop.trf.xlu0
      %v281 = vpop.trf.xlu0
      %v282 = vpop.trf.xlu0
      %v283 = vpop.trf.xlu0
      %v284 = vpop.trf.xlu0
      %v285 = vpop.trf.xlu0
      %v286 = vpop.trf.xlu0
      %v287 = vpop.trf.xlu0
      %v288 = vpop.trf.xlu0
      %v289 = vpop.trf.xlu0
      %v290 = vpop.trf.xlu0
      %291 = vxpose.xlu0.b32.start [1/16] %v196, 128
      %292 = vxpose.xlu0.b32.cont [2/16] %v198, 128
      %293 = vxpose.xlu0.b32.cont [3/16] %v200, 128
      %294 = vxpose.xlu0.b32.cont [4/16] %v202, 128
      %295 = vxpose.xlu0.b32.cont [5/16] %v204, 128
      %296 = vxpose.xlu0.b32.cont [6/16] %v206, 128
      %297 = vxpose.xlu0.b32.cont [7/16] %v208, 128
      %298 = vxpose.xlu0.b32.cont [8/16] %v210, 128
      %299 = vxpose.xlu0.b32.cont [9/16] %v212, 128
      %300 = vxpose.xlu0.b32.cont [10/16] %v214, 128
      %301 = vxpose.xlu0.b32.cont [11/16] %v216, 128
      %302 = vxpose.xlu0.b32.cont [12/16] %v218, 128
      %303 = vxpose.xlu0.b32.cont [13/16] %v220, 128
      %304 = vxpose.xlu0.b32.cont [14/16] %v222, 128
      %305 = vxpose.xlu0.b32.cont [15/16] %v224, 128
      %306 = vxpose.xlu0.b32.end [16/16] %v226, 128
      %v307 = vpop.trf.xlu0
      %v308 = vpop.trf.xlu0
      %v309 = vpop.trf.xlu0
      %v310 = vpop.trf.xlu0
      %v311 = vpop.trf.xlu0
      %v312 = vpop.trf.xlu0
      %v313 = vpop.trf.xlu0
      %v314 = vpop.trf.xlu0
      %v315 = vpop.trf.xlu0
      %v316 = vpop.trf.xlu0
      %v317 = vpop.trf.xlu0
      %v318 = vpop.trf.xlu0
      %v319 = vpop.trf.xlu0
      %v320 = vpop.trf.xlu0
      %v321 = vpop.trf.xlu0
      %v322 = vpop.trf.xlu0
      %323 = vmatpush.msra.mxu0 %v225
      %324 = vmatpush.msra.mxu0 %v223
      %325 = vmatpush.msra.mxu0 %v221
      %326 = vmatpush.msra.mxu0 %v219
      %327 = vmatpush.msra.mxu0 %v217
      %328 = vmatpush.msra.mxu0 %v215
      %329 = vmatpush.msra.mxu0 %v213
      %330 = vmatpush.msra.mxu0 %v211
      %331 = vmatpush.msra.mxu0 %v209
      %332 = vmatpush.msra.mxu0 %v207
      %333 = vmatpush.msra.mxu0 %v205
      %334 = vmatpush.msra.mxu0 %v203
      %335 = vmatpush.msra.mxu0 %v201
      %336 = vmatpush.msra.mxu0 %v199
      %337 = vmatpush.msra.mxu0 %v197
      %338 = vmatpush.msra.mxu0 %v195
      %339 = vmatmul.f32.gmra.mxu0 %v275
      %v340 = vpop.f32.mrf.mxu0
      %v341 = vadd.f32 0.0, %v340
      %342 = vmatmul.f32.gmra.mxu0 %v276
      %v343 = vpop.f32.mrf.mxu0
      %v344 = vadd.f32 0.0, %v343
      %345 = vmatmul.f32.gmra.mxu0 %v277
      %v346 = vpop.f32.mrf.mxu0
      %v347 = vadd.f32 0.0, %v346
      %348 = vmatmul.f32.gmra.mxu0 %v278
      %v349 = vpop.f32.mrf.mxu0
      %v350 = vadd.f32 0.0, %v349
      %351 = vmatmul.f32.gmra.mxu0 %v279
      %v352 = vpop.f32.mrf.mxu0
      %v353 = vadd.f32 0.0, %v352
      %354 = vmatmul.f32.gmra.mxu0 %v280
      %v355 = vpop.f32.mrf.mxu0
      %v356 = vadd.f32 0.0, %v355
      %357 = vmatmul.f32.gmra.mxu0 %v281
      %v358 = vpop.f32.mrf.mxu0
      %v359 = vadd.f32 0.0, %v358
      %360 = vmatmul.f32.gmra.mxu0 %v282
      %v361 = vpop.f32.mrf.mxu0
      %v362 = vadd.f32 0.0, %v361
      %363 = vmatmul.f32.gmra.mxu0 %v283
      %v364 = vpop.f32.mrf.mxu0
      %v365 = vadd.f32 0.0, %v364
      %366 = vmatmul.f32.gmra.mxu0 %v284
      %v367 = vpop.f32.mrf.mxu0
      %v368 = vadd.f32 0.0, %v367
      %369 = vmatmul.f32.gmra.mxu0 %v285
      %v370 = vpop.f32.mrf.mxu0
      %v371 = vadd.f32 0.0, %v370
      %372 = vmatmul.f32.gmra.mxu0 %v286
      %v373 = vpop.f32.mrf.mxu0
      %v374 = vadd.f32 0.0, %v373
      %375 = vmatmul.f32.gmra.mxu0 %v287
      %v376 = vpop.f32.mrf.mxu0
      %v377 = vadd.f32 0.0, %v376
      %378 = vmatmul.f32.gmra.mxu0 %v288
      %v379 = vpop.f32.mrf.mxu0
      %v380 = vadd.f32 0.0, %v379
      %381 = vmatmul.f32.gmra.mxu0 %v289
      %v382 = vpop.f32.mrf.mxu0
      %v383 = vadd.f32 0.0, %v382
      %384 = vmatmul.f32.gmra.mxu0 %v290
      %v385 = vpop.f32.mrf.mxu0
      %v386 = vadd.f32 0.0, %v385
      %387 = vmatmul.f32.gmra.mxu0 %v307
      %v388 = vpop.f32.mrf.mxu0
      %v389 = vadd.f32 0.0, %v388
      %390 = vmatmul.f32.gmra.mxu0 %v308
      %v391 = vpop.f32.mrf.mxu0
      %v392 = vadd.f32 0.0, %v391
      %393 = vmatmul.f32.gmra.mxu0 %v309
      %v394 = vpop.f32.mrf.mxu0
      %v395 = vadd.f32 0.0, %v394
      %396 = vmatmul.f32.gmra.mxu0 %v310
      %v397 = vpop.f32.mrf.mxu0
      %v398 = vadd.f32 0.0, %v397
      %399 = vmatmul.f32.gmra.mxu0 %v311
      %v400 = vpop.f32.mrf.mxu0
      %v401 = vadd.f32 0.0, %v400
      %402 = vmatmul.f32.gmra.mxu0 %v312
      %v403 = vpop.f32.mrf.mxu0
      %v404 = vadd.f32 0.0, %v403
      %405 = vmatmul.f32.gmra.mxu0 %v313
      %v406 = vpop.f32.mrf.mxu0
      %v407 = vadd.f32 0.0, %v406
      %408 = vmatmul.f32.gmra.mxu0 %v314
      %v409 = vpop.f32.mrf.mxu0
      %v410 = vadd.f32 0.0, %v409
      %411 = vmatmul.f32.gmra.mxu0 %v315
      %v412 = vpop.f32.mrf.mxu0
      %v413 = vadd.f32 0.0, %v412
      %414 = vmatmul.f32.gmra.mxu0 %v316
      %v415 = vpop.f32.mrf.mxu0
      %v416 = vadd.f32 0.0, %v415
      %417 = vmatmul.f32.gmra.mxu0 %v317
      %v418 = vpop.f32.mrf.mxu0
      %v419 = vadd.f32 0.0, %v418
      %420 = vmatmul.f32.gmra.mxu0 %v318
      %v421 = vpop.f32.mrf.mxu0
      %v422 = vadd.f32 0.0, %v421
      %423 = vmatmul.f32.gmra.mxu0 %v319
      %v424 = vpop.f32.mrf.mxu0
      %v425 = vadd.f32 0.0, %v424
      %426 = vmatmul.f32.gmra.mxu0 %v320
      %v427 = vpop.f32.mrf.mxu0
      %v428 = vadd.f32 0.0, %v427
      %429 = vmatmul.f32.gmra.mxu0 %v321
      %v430 = vpop.f32.mrf.mxu0
      %v431 = vadd.f32 0.0, %v430
      %432 = vmatmul.f32.gmra.mxu0 %v322
      %v433 = vpop.f32.mrf.mxu0
      %v434 = vadd.f32 0.0, %v433
      %435 = vdwg.mxu0
      %436 = vmatpush.msra.mxu0 %v226
      %437 = vmatpush.msra.mxu0 %v224
      %438 = vmatpush.msra.mxu0 %v222
      %439 = vmatpush.msra.mxu0 %v220
      %440 = vmatpush.msra.mxu0 %v218
      %441 = vmatpush.msra.mxu0 %v216
      %442 = vmatpush.msra.mxu0 %v214
      %443 = vmatpush.msra.mxu0 %v212
      %444 = vmatpush.msra.mxu0 %v210
      %445 = vmatpush.msra.mxu0 %v208
      %446 = vmatpush.msra.mxu0 %v206
      %447 = vmatpush.msra.mxu0 %v204
      %448 = vmatpush.msra.mxu0 %v202
      %449 = vmatpush.msra.mxu0 %v200
      %450 = vmatpush.msra.mxu0 %v198
      %451 = vmatpush.msra.mxu0 %v196
      %452 = vmatmul.f32.gmra.mxu0 %v275
      %v453 = vpop.f32.mrf.mxu0
      %v454 = vadd.f32 0.0, %v453
      %455 = vmatmul.f32.gmra.mxu0 %v276
      %v456 = vpop.f32.mrf.mxu0
      %v457 = vadd.f32 0.0, %v456
      %458 = vmatmul.f32.gmra.mxu0 %v277
      %v459 = vpop.f32.mrf.mxu0
      %v460 = vadd.f32 0.0, %v459
      %461 = vmatmul.f32.gmra.mxu0 %v278
      %v462 = vpop.f32.mrf.mxu0
      %v463 = vadd.f32 0.0, %v462
      %464 = vmatmul.f32.gmra.mxu0 %v279
      %v465 = vpop.f32.mrf.mxu0
      %v466 = vadd.f32 0.0, %v465
      %467 = vmatmul.f32.gmra.mxu0 %v280
      %v468 = vpop.f32.mrf.mxu0
      %v469 = vadd.f32 0.0, %v468
      %470 = vmatmul.f32.gmra.mxu0 %v281
      %v471 = vpop.f32.mrf.mxu0
      %v472 = vadd.f32 0.0, %v471
      %473 = vmatmul.f32.gmra.mxu0 %v282
      %v474 = vpop.f32.mrf.mxu0
      %v475 = vadd.f32 0.0, %v474
      %476 = vmatmul.f32.gmra.mxu0 %v283
      %v477 = vpop.f32.mrf.mxu0
      %v478 = vadd.f32 0.0, %v477
      %479 = vmatmul.f32.gmra.mxu0 %v284
      %v480 = vpop.f32.mrf.mxu0
      %v481 = vadd.f32 0.0, %v480
      %482 = vmatmul.f32.gmra.mxu0 %v285
      %v483 = vpop.f32.mrf.mxu0
      %v484 = vadd.f32 0.0, %v483
      %485 = vmatmul.f32.gmra.mxu0 %v286
      %v486 = vpop.f32.mrf.mxu0
      %v487 = vadd.f32 0.0, %v486
      %488 = vmatmul.f32.gmra.mxu0 %v287
      %v489 = vpop.f32.mrf.mxu0
      %v490 = vadd.f32 0.0, %v489
      %491 = vmatmul.f32.gmra.mxu0 %v288
      %v492 = vpop.f32.mrf.mxu0
      %v493 = vadd.f32 0.0, %v492
      %494 = vmatmul.f32.gmra.mxu0 %v289
      %v495 = vpop.f32.mrf.mxu0
      %v496 = vadd.f32 0.0, %v495
      %497 = vmatmul.f32.gmra.mxu0 %v290
      %v498 = vpop.f32.mrf.mxu0
      %v499 = vadd.f32 0.0, %v498
      %500 = vmatmul.f32.gmra.mxu0 %v307
      %v501 = vpop.f32.mrf.mxu0
      %v502 = vadd.f32 0.0, %v501
      %503 = vmatmul.f32.gmra.mxu0 %v308
      %v504 = vpop.f32.mrf.mxu0
      %v505 = vadd.f32 0.0, %v504
      %506 = vmatmul.f32.gmra.mxu0 %v309
      %v507 = vpop.f32.mrf.mxu0
      %v508 = vadd.f32 0.0, %v507
      %509 = vmatmul.f32.gmra.mxu0 %v310
      %v510 = vpop.f32.mrf.mxu0
      %v511 = vadd.f32 0.0, %v510
      %512 = vmatmul.f32.gmra.mxu0 %v311
      %v513 = vpop.f32.mrf.mxu0
      %v514 = vadd.f32 0.0, %v513
      %515 = vmatmul.f32.gmra.mxu0 %v312
      %v516 = vpop.f32.mrf.mxu0
      %v517 = vadd.f32 0.0, %v516
      %518 = vmatmul.f32.gmra.mxu0 %v313
      %v519 = vpop.f32.mrf.mxu0
      %v520 = vadd.f32 0.0, %v519
      %521 = vmatmul.f32.gmra.mxu0 %v314
      %v522 = vpop.f32.mrf.mxu0
      %v523 = vadd.f32 0.0, %v522
      %524 = vmatmul.f32.gmra.mxu0 %v315
      %v525 = vpop.f32.mrf.mxu0
      %v526 = vadd.f32 0.0, %v525
      %527 = vmatmul.f32.gmra.mxu0 %v316
      %v528 = vpop.f32.mrf.mxu0
      %v529 = vadd.f32 0.0, %v528
      %530 = vmatmul.f32.gmra.mxu0 %v317
      %v531 = vpop.f32.mrf.mxu0
      %v532 = vadd.f32 0.0, %v531
      %533 = vmatmul.f32.gmra.mxu0 %v318
      %v534 = vpop.f32.mrf.mxu0
      %v535 = vadd.f32 0.0, %v534
      %536 = vmatmul.f32.gmra.mxu0 %v319
      %v537 = vpop.f32.mrf.mxu0
      %v538 = vadd.f32 0.0, %v537
      %539 = vmatmul.f32.gmra.mxu0 %v320
      %v540 = vpop.f32.mrf.mxu0
      %v541 = vadd.f32 0.0, %v540
      %542 = vmatmul.f32.gmra.mxu0 %v321
      %v543 = vpop.f32.mrf.mxu0
      %v544 = vadd.f32 0.0, %v543
      %545 = vmatmul.f32.gmra.mxu0 %v322
      %v546 = vpop.f32.mrf.mxu0
      %v547 = vadd.f32 0.0, %v546
      %548 = vdwg.mxu0
      %v549 = vmax.f32 %v341, %v454
      %550 = vmax.xlane.f32.xlu0 %v549
      %v551 = vpop.xlane.xlu0 %550
      %v552 = vmax.f32 %v344, %v457
      %553 = vmax.xlane.f32.xlu0 %v552
      %v554 = vpop.xlane.xlu0 %553
      %v555 = vmax.f32 %v347, %v460
      %556 = vmax.xlane.f32.xlu0 %v555
      %v557 = vpop.xlane.xlu0 %556
      %v558 = vmax.f32 %v350, %v463
      %559 = vmax.xlane.f32.xlu0 %v558
      %v560 = vpop.xlane.xlu0 %559
      %v561 = vmax.f32 %v353, %v466
      %562 = vmax.xlane.f32.xlu0 %v561
      %v563 = vpop.xlane.xlu0 %562
      %v564 = vmax.f32 %v356, %v469
      %565 = vmax.xlane.f32.xlu0 %v564
      %v566 = vpop.xlane.xlu0 %565
      %v567 = vmax.f32 %v359, %v472
      %568 = vmax.xlane.f32.xlu0 %v567
      %v569 = vpop.xlane.xlu0 %568
      %v570 = vmax.f32 %v362, %v475
      %571 = vmax.xlane.f32.xlu0 %v570
      %v572 = vpop.xlane.xlu0 %571
      %v573 = vmax.f32 %v365, %v478
      %574 = vmax.xlane.f32.xlu0 %v573
      %v575 = vpop.xlane.xlu0 %574
      %v576 = vmax.f32 %v368, %v481
      %577 = vmax.xlane.f32.xlu0 %v576
      %v578 = vpop.xlane.xlu0 %577
      %v579 = vmax.f32 %v371, %v484
      %580 = vmax.xlane.f32.xlu0 %v579
      %v581 = vpop.xlane.xlu0 %580
      %v582 = vmax.f32 %v374, %v487
      %583 = vmax.xlane.f32.xlu0 %v582
      %v584 = vpop.xlane.xlu0 %583
      %v585 = vmax.f32 %v377, %v490
      %586 = vmax.xlane.f32.xlu0 %v585
      %v587 = vpop.xlane.xlu0 %586
      %v588 = vmax.f32 %v380, %v493
      %589 = vmax.xlane.f32.xlu0 %v588
      %v590 = vpop.xlane.xlu0 %589
      %v591 = vmax.f32 %v383, %v496
      %592 = vmax.xlane.f32.xlu0 %v591
      %v593 = vpop.xlane.xlu0 %592
      %v594 = vmax.f32 %v386, %v499
      %595 = vmax.xlane.f32.xlu0 %v594
      %v596 = vpop.xlane.xlu0 %595
      %v597 = vmax.f32 %v389, %v502
      %598 = vmax.xlane.f32.xlu0 %v597
      %v599 = vpop.xlane.xlu0 %598
      %v600 = vmax.f32 %v392, %v505
      %601 = vmax.xlane.f32.xlu0 %v600
      %v602 = vpop.xlane.xlu0 %601
      %v603 = vmax.f32 %v395, %v508
      %604 = vmax.xlane.f32.xlu0 %v603
      %v605 = vpop.xlane.xlu0 %604
      %v606 = vmax.f32 %v398, %v511
      %607 = vmax.xlane.f32.xlu0 %v606
      %v608 = vpop.xlane.xlu0 %607
      %v609 = vmax.f32 %v401, %v514
      %610 = vmax.xlane.f32.xlu0 %v609
      %v611 = vpop.xlane.xlu0 %610
      %v612 = vmax.f32 %v404, %v517
      %613 = vmax.xlane.f32.xlu0 %v612
      %v614 = vpop.xlane.xlu0 %613
      %v615 = vmax.f32 %v407, %v520
      %616 = vmax.xlane.f32.xlu0 %v615
      %v617 = vpop.xlane.xlu0 %616
      %v618 = vmax.f32 %v410, %v523
      %619 = vmax.xlane.f32.xlu0 %v618
      %v620 = vpop.xlane.xlu0 %619
      %v621 = vmax.f32 %v413, %v526
      %622 = vmax.xlane.f32.xlu0 %v621
      %v623 = vpop.xlane.xlu0 %622
      %v624 = vmax.f32 %v416, %v529
      %625 = vmax.xlane.f32.xlu0 %v624
      %v626 = vpop.xlane.xlu0 %625
      %v627 = vmax.f32 %v419, %v532
      %628 = vmax.xlane.f32.xlu0 %v627
      %v629 = vpop.xlane.xlu0 %628
      %v630 = vmax.f32 %v422, %v535
      %631 = vmax.xlane.f32.xlu0 %v630
      %v632 = vpop.xlane.xlu0 %631
      %v633 = vmax.f32 %v425, %v538
      %634 = vmax.xlane.f32.xlu0 %v633
      %v635 = vpop.xlane.xlu0 %634
      %v636 = vmax.f32 %v428, %v541
      %637 = vmax.xlane.f32.xlu0 %v636
      %v638 = vpop.xlane.xlu0 %637
      %v639 = vmax.f32 %v431, %v544
      %640 = vmax.xlane.f32.xlu0 %v639
      %v641 = vpop.xlane.xlu0 %640
      %v642 = vmax.f32 %v434, %v547
      %643 = vmax.xlane.f32.xlu0 %v642
      %v644 = vpop.xlane.xlu0 %643
      %v645 = vsub.f32 %v341, %v551
      %v646 = vsub.f32 %v454, %v551
      %v647 = vsub.f32 %v344, %v554
      %v648 = vsub.f32 %v457, %v554
      %v649 = vsub.f32 %v347, %v557
      %v650 = vsub.f32 %v460, %v557
      %v651 = vsub.f32 %v350, %v560
      %v652 = vsub.f32 %v463, %v560
      %v653 = vsub.f32 %v353, %v563
      %v654 = vsub.f32 %v466, %v563
      %v655 = vsub.f32 %v356, %v566
      %v656 = vsub.f32 %v469, %v566
      %v657 = vsub.f32 %v359, %v569
      %v658 = vsub.f32 %v472, %v569
      %v659 = vsub.f32 %v362, %v572
      %v660 = vsub.f32 %v475, %v572
      %v661 = vsub.f32 %v365, %v575
      %v662 = vsub.f32 %v478, %v575
      %v663 = vsub.f32 %v368, %v578
      %v664 = vsub.f32 %v481, %v578
      %v665 = vsub.f32 %v371, %v581
      %v666 = vsub.f32 %v484, %v581
      %v667 = vsub.f32 %v374, %v584
      %v668 = vsub.f32 %v487, %v584
      %v669 = vsub.f32 %v377, %v587
      %v670 = vsub.f32 %v490, %v587
      %v671 = vsub.f32 %v380, %v590
      %v672 = vsub.f32 %v493, %v590
      %v673 = vsub.f32 %v383, %v593
      %v674 = vsub.f32 %v496, %v593
      %v675 = vsub.f32 %v386, %v596
      %v676 = vsub.f32 %v499, %v596
      %v677 = vsub.f32 %v389, %v599
      %v678 = vsub.f32 %v502, %v599
      %v679 = vsub.f32 %v392, %v602
      %v680 = vsub.f32 %v505, %v602
      %v681 = vsub.f32 %v395, %v605
      %v682 = vsub.f32 %v508, %v605
      %v683 = vsub.f32 %v398, %v608
      %v684 = vsub.f32 %v511, %v608
      %v685 = vsub.f32 %v401, %v611
      %v686 = vsub.f32 %v514, %v611
      %v687 = vsub.f32 %v404, %v614
      %v688 = vsub.f32 %v517, %v614
      %v689 = vsub.f32 %v407, %v617
      %v690 = vsub.f32 %v520, %v617
      %v691 = vsub.f32 %v410, %v620
      %v692 = vsub.f32 %v523, %v620
      %v693 = vsub.f32 %v413, %v623
      %v694 = vsub.f32 %v526, %v623
      %v695 = vsub.f32 %v416, %v626
      %v696 = vsub.f32 %v529, %v626
      %v697 = vsub.f32 %v419, %v629
      %v698 = vsub.f32 %v532, %v629
      %v699 = vsub.f32 %v422, %v632
      %v700 = vsub.f32 %v535, %v632
      %v701 = vsub.f32 %v425, %v635
      %v702 = vsub.f32 %v538, %v635
      %v703 = vsub.f32 %v428, %v638
      %v704 = vsub.f32 %v541, %v638
      %v705 = vsub.f32 %v431, %v641
      %v706 = vsub.f32 %v544, %v641
      %v707 = vsub.f32 %v434, %v644
      %v708 = vsub.f32 %v547, %v644
      %v709 = vmul.f32 %v645, 1.442695
      %v710 = vpow.pop %v709
      %v711 = vmul.f32 %v646, 1.442695
      %v712 = vpow.pop %v711
      %v713 = vmul.f32 %v647, 1.442695
      %v714 = vpow.pop %v713
      %v715 = vmul.f32 %v648, 1.442695
      %v716 = vpow.pop %v715
      %v717 = vmul.f32 %v649, 1.442695
      %v718 = vpow.pop %v717
      %v719 = vmul.f32 %v650, 1.442695
      %v720 = vpow.pop %v719
      %v721 = vmul.f32 %v651, 1.442695
      %v722 = vpow.pop %v721
      %v723 = vmul.f32 %v652, 1.442695
      %v724 = vpow.pop %v723
      %v725 = vmul.f32 %v653, 1.442695
      %v726 = vpow.pop %v725
      %v727 = vmul.f32 %v654, 1.442695
      %v728 = vpow.pop %v727
      %v729 = vmul.f32 %v655, 1.442695
      %v730 = vpow.pop %v729
      %v731 = vmul.f32 %v656, 1.442695
      %v732 = vpow.pop %v731
      %v733 = vmul.f32 %v657, 1.442695
      %v734 = vpow.pop %v733
      %v735 = vmul.f32 %v658, 1.442695
      %v736 = vpow.pop %v735
      %v737 = vmul.f32 %v659, 1.442695
      %v738 = vpow.pop %v737
      %v739 = vmul.f32 %v660, 1.442695
      %v740 = vpow.pop %v739
      %v741 = vmul.f32 %v661, 1.442695
      %v742 = vpow.pop %v741
      %v743 = vmul.f32 %v662, 1.442695
      %v744 = vpow.pop %v743
      %v745 = vmul.f32 %v663, 1.442695
      %v746 = vpow.pop %v745
      %v747 = vmul.f32 %v664, 1.442695
      %v748 = vpow.pop %v747
      %v749 = vmul.f32 %v665, 1.442695
      %v750 = vpow.pop %v749
      %v751 = vmul.f32 %v666, 1.442695
      %v752 = vpow.pop %v751
      %v753 = vmul.f32 %v667, 1.442695
      %v754 = vpow.pop %v753
      %v755 = vmul.f32 %v668, 1.442695
      %v756 = vpow.pop %v755
      %v757 = vmul.f32 %v669, 1.442695
      %v758 = vpow.pop %v757
      %v759 = vmul.f32 %v670, 1.442695
      %v760 = vpow.pop %v759
      %v761 = vmul.f32 %v671, 1.442695
      %v762 = vpow.pop %v761
      %v763 = vmul.f32 %v672, 1.442695
      %v764 = vpow.pop %v763
      %v765 = vmul.f32 %v673, 1.442695
      %v766 = vpow.pop %v765
      %v767 = vmul.f32 %v674, 1.442695
      %v768 = vpow.pop %v767
      %v769 = vmul.f32 %v675, 1.442695
      %v770 = vpow.pop %v769
      %v771 = vmul.f32 %v676, 1.442695
      %v772 = vpow.pop %v771
      %v773 = vmul.f32 %v677, 1.442695
      %v774 = vpow.pop %v773
      %v775 = vmul.f32 %v678, 1.442695
      %v776 = vpow.pop %v775
      %v777 = vmul.f32 %v679, 1.442695
      %v778 = vpow.pop %v777
      %v779 = vmul.f32 %v680, 1.442695
      %v780 = vpow.pop %v779
      %v781 = vmul.f32 %v681, 1.442695
      %v782 = vpow.pop %v781
      %v783 = vmul.f32 %v682, 1.442695
      %v784 = vpow.pop %v783
      %v785 = vmul.f32 %v683, 1.442695
      %v786 = vpow.pop %v785
      %v787 = vmul.f32 %v684, 1.442695
      %v788 = vpow.pop %v787
      %v789 = vmul.f32 %v685, 1.442695
      %v790 = vpow.pop %v789
      %v791 = vmul.f32 %v686, 1.442695
      %v792 = vpow.pop %v791
      %v793 = vmul.f32 %v687, 1.442695
      %v794 = vpow.pop %v793
      %v795 = vmul.f32 %v688, 1.442695
      %v796 = vpow.pop %v795
      %v797 = vmul.f32 %v689, 1.442695
      %v798 = vpow.pop %v797
      %v799 = vmul.f32 %v690, 1.442695
      %v800 = vpow.pop %v799
      %v801 = vmul.f32 %v691, 1.442695
      %v802 = vpow.pop %v801
      %v803 = vmul.f32 %v692, 1.442695
      %v804 = vpow.pop %v803
      %v805 = vmul.f32 %v693, 1.442695
      %v806 = vpow.pop %v805
      %v807 = vmul.f32 %v694, 1.442695
      %v808 = vpow.pop %v807
      %v809 = vmul.f32 %v695, 1.442695
      %v810 = vpow.pop %v809
      %v811 = vmul.f32 %v696, 1.442695
      %v812 = vpow.pop %v811
      %v813 = vmul.f32 %v697, 1.442695
      %v814 = vpow.pop %v813
      %v815 = vmul.f32 %v698, 1.442695
      %v816 = vpow.pop %v815
      %v817 = vmul.f32 %v699, 1.442695
      %v818 = vpow.pop %v817
      %v819 = vmul.f32 %v700, 1.442695
      %v820 = vpow.pop %v819
      %v821 = vmul.f32 %v701, 1.442695
      %v822 = vpow.pop %v821
      %v823 = vmul.f32 %v702, 1.442695
      %v824 = vpow.pop %v823
      %v825 = vmul.f32 %v703, 1.442695
      %v826 = vpow.pop %v825
      %v827 = vmul.f32 %v704, 1.442695
      %v828 = vpow.pop %v827
      %v829 = vmul.f32 %v705, 1.442695
      %v830 = vpow.pop %v829
      %v831 = vmul.f32 %v706, 1.442695
      %v832 = vpow.pop %v831
      %v833 = vmul.f32 %v707, 1.442695
      %v834 = vpow.pop %v833
      %v835 = vmul.f32 %v708, 1.442695
      %v836 = vpow.pop %v835
      %v837 = vadd.f32 %v710, %v712
      %838 = vadd.xlane.f32.xlu0 %v837
      %v839 = vpop.xlane.xlu0 %838
      %v840 = vadd.f32 %v714, %v716
      %841 = vadd.xlane.f32.xlu0 %v840
      %v842 = vpop.xlane.xlu0 %841
      %v843 = vadd.f32 %v718, %v720
      %844 = vadd.xlane.f32.xlu0 %v843
      %v845 = vpop.xlane.xlu0 %844
      %v846 = vadd.f32 %v722, %v724
      %847 = vadd.xlane.f32.xlu0 %v846
      %v848 = vpop.xlane.xlu0 %847
      %v849 = vadd.f32 %v726, %v728
      %850 = vadd.xlane.f32.xlu0 %v849
      %v851 = vpop.xlane.xlu0 %850
      %v852 = vadd.f32 %v730, %v732
      %853 = vadd.xlane.f32.xlu0 %v852
      %v854 = vpop.xlane.xlu0 %853
      %v855 = vadd.f32 %v734, %v736
      %856 = vadd.xlane.f32.xlu0 %v855
      %v857 = vpop.xlane.xlu0 %856
      %v858 = vadd.f32 %v738, %v740
      %859 = vadd.xlane.f32.xlu0 %v858
      %v860 = vpop.xlane.xlu0 %859
      %v861 = vadd.f32 %v742, %v744
      %862 = vadd.xlane.f32.xlu0 %v861
      %v863 = vpop.xlane.xlu0 %862
      %v864 = vadd.f32 %v746, %v748
      %865 = vadd.xlane.f32.xlu0 %v864
      %v866 = vpop.xlane.xlu0 %865
      %v867 = vadd.f32 %v750, %v752
      %868 = vadd.xlane.f32.xlu0 %v867
      %v869 = vpop.xlane.xlu0 %868
      %v870 = vadd.f32 %v754, %v756
      %871 = vadd.xlane.f32.xlu0 %v870
      %v872 = vpop.xlane.xlu0 %871
      %v873 = vadd.f32 %v758, %v760
      %874 = vadd.xlane.f32.xlu0 %v873
      %v875 = vpop.xlane.xlu0 %874
      %v876 = vadd.f32 %v762, %v764
      %877 = vadd.xlane.f32.xlu0 %v876
      %v878 = vpop.xlane.xlu0 %877
      %v879 = vadd.f32 %v766, %v768
      %880 = vadd.xlane.f32.xlu0 %v879
      %v881 = vpop.xlane.xlu0 %880
      %v882 = vadd.f32 %v770, %v772
      %883 = vadd.xlane.f32.xlu0 %v882
      %v884 = vpop.xlane.xlu0 %883
      %v885 = vadd.f32 %v774, %v776
      %886 = vadd.xlane.f32.xlu0 %v885
      %v887 = vpop.xlane.xlu0 %886
      %v888 = vadd.f32 %v778, %v780
      %889 = vadd.xlane.f32.xlu0 %v888
      %v890 = vpop.xlane.xlu0 %889
      %v891 = vadd.f32 %v782, %v784
      %892 = vadd.xlane.f32.xlu0 %v891
      %v893 = vpop.xlane.xlu0 %892
      %v894 = vadd.f32 %v786, %v788
      %895 = vadd.xlane.f32.xlu0 %v894
      %v896 = vpop.xlane.xlu0 %895
      %v897 = vadd.f32 %v790, %v792
      %898 = vadd.xlane.f32.xlu0 %v897
      %v899 = vpop.xlane.xlu0 %898
      %v900 = vadd.f32 %v794, %v796
      %901 = vadd.xlane.f32.xlu0 %v900
      %v902 = vpop.xlane.xlu0 %901
      %v903 = vadd.f32 %v798, %v800
      %904 = vadd.xlane.f32.xlu0 %v903
      %v905 = vpop.xlane.xlu0 %904
      %v906 = vadd.f32 %v802, %v804
      %907 = vadd.xlane.f32.xlu0 %v906
      %v908 = vpop.xlane.xlu0 %907
      %v909 = vadd.f32 %v806, %v808
      %910 = vadd.xlane.f32.xlu0 %v909
      %v911 = vpop.xlane.xlu0 %910
      %v912 = vadd.f32 %v810, %v812
      %913 = vadd.xlane.f32.xlu0 %v912
      %v914 = vpop.xlane.xlu0 %913
      %v915 = vadd.f32 %v814, %v816
      %916 = vadd.xlane.f32.xlu0 %v915
      %v917 = vpop.xlane.xlu0 %916
      %v918 = vadd.f32 %v818, %v820
      %919 = vadd.xlane.f32.xlu0 %v918
      %v920 = vpop.xlane.xlu0 %919
      %v921 = vadd.f32 %v822, %v824
      %922 = vadd.xlane.f32.xlu0 %v921
      %v923 = vpop.xlane.xlu0 %922
      %v924 = vadd.f32 %v826, %v828
      %925 = vadd.xlane.f32.xlu0 %v924
      %v926 = vpop.xlane.xlu0 %925
      %v927 = vadd.f32 %v830, %v832
      %928 = vadd.xlane.f32.xlu0 %v927
      %v929 = vpop.xlane.xlu0 %928
      %v930 = vadd.f32 %v834, %v836
      %931 = vadd.xlane.f32.xlu0 %v930
      %v932 = vpop.xlane.xlu0 %931
      %v933 = vrcp.pop %v839
      %v934 = vmul.f32 %v839, %v933
      %v935 = vsub.f32 1.0, %v934
      %v936 = vmul.f32 %v933, %v935
      %v937 = vadd.f32 %v933, %v936
      %vm938 = vweird.f32 %v839
      %vm939 = vweird.f32 %v933
      %vm940 = vmor %vm938, %vm939
      %v941 = vsel %vm940, %v933, %v937
      %v942 = vand.u32 2147483647, %v839
      %vm943 = vcmp.eq.f32.partialorder %v942, 8.507059e+37
      %v944 = vand.u32 %v839, 2147483648
      %v945 = vor.u32 1.1754944e-38, %v944
      %v946 = vsel %vm943, %v945, %v941
      %v947 = vrcp.pop %v842
      %v948 = vmul.f32 %v842, %v947
      %v949 = vsub.f32 1.0, %v948
      %v950 = vmul.f32 %v947, %v949
      %v951 = vadd.f32 %v947, %v950
      %vm952 = vweird.f32 %v842
      %vm953 = vweird.f32 %v947
      %vm954 = vmor %vm952, %vm953
      %v955 = vsel %vm954, %v947, %v951
      %v956 = vand.u32 2147483647, %v842
      %vm957 = vcmp.eq.f32.partialorder %v956, 8.507059e+37
      %v958 = vand.u32 %v842, 2147483648
      %v959 = vor.u32 1.1754944e-38, %v958
      %v960 = vsel %vm957, %v959, %v955
      %v961 = vrcp.pop %v845
      %v962 = vmul.f32 %v845, %v961
      %v963 = vsub.f32 1.0, %v962
      %v964 = vmul.f32 %v961, %v963
      %v965 = vadd.f32 %v961, %v964
      %vm966 = vweird.f32 %v845
      %vm967 = vweird.f32 %v961
      %vm968 = vmor %vm966, %vm967
      %v969 = vsel %vm968, %v961, %v965
      %v970 = vand.u32 2147483647, %v845
      %vm971 = vcmp.eq.f32.partialorder %v970, 8.507059e+37
      %v972 = vand.u32 %v845, 2147483648
      %v973 = vor.u32 1.1754944e-38, %v972
      %v974 = vsel %vm971, %v973, %v969
      %v975 = vrcp.pop %v848
      %v976 = vmul.f32 %v848, %v975
      %v977 = vsub.f32 1.0, %v976
      %v978 = vmul.f32 %v975, %v977
      %v979 = vadd.f32 %v975, %v978
      %vm980 = vweird.f32 %v848
      %vm981 = vweird.f32 %v975
      %vm982 = vmor %vm980, %vm981
      %v983 = vsel %vm982, %v975, %v979
      %v984 = vand.u32 2147483647, %v848
      %vm985 = vcmp.eq.f32.partialorder %v984, 8.507059e+37
      %v986 = vand.u32 %v848, 2147483648
      %v987 = vor.u32 1.1754944e-38, %v986
      %v988 = vsel %vm985, %v987, %v983
      %v989 = vrcp.pop %v851
      %v990 = vmul.f32 %v851, %v989
      %v991 = vsub.f32 1.0, %v990
      %v992 = vmul.f32 %v989, %v991
      %v993 = vadd.f32 %v989, %v992
      %vm994 = vweird.f32 %v851
      %vm995 = vweird.f32 %v989
      %vm996 = vmor %vm994, %vm995
      %v997 = vsel %vm996, %v989, %v993
      %v998 = vand.u32 2147483647, %v851
      %vm999 = vcmp.eq.f32.partialorder %v998, 8.507059e+37
      %v1000 = vand.u32 %v851, 2147483648
      %v1001 = vor.u32 1.1754944e-38, %v1000
      %v1002 = vsel %vm999, %v1001, %v997
      %v1003 = vrcp.pop %v854
      %v1004 = vmul.f32 %v854, %v1003
      %v1005 = vsub.f32 1.0, %v1004
      %v1006 = vmul.f32 %v1003, %v1005
      %v1007 = vadd.f32 %v1003, %v1006
      %vm1008 = vweird.f32 %v854
      %vm1009 = vweird.f32 %v1003
      %vm1010 = vmor %vm1008, %vm1009
      %v1011 = vsel %vm1010, %v1003, %v1007
      %v1012 = vand.u32 2147483647, %v854
      %vm1013 = vcmp.eq.f32.partialorder %v1012, 8.507059e+37
      %v1014 = vand.u32 %v854, 2147483648
      %v1015 = vor.u32 1.1754944e-38, %v1014
      %v1016 = vsel %vm1013, %v1015, %v1011
      %v1017 = vrcp.pop %v857
      %v1018 = vmul.f32 %v857, %v1017
      %v1019 = vsub.f32 1.0, %v1018
      %v1020 = vmul.f32 %v1017, %v1019
      %v1021 = vadd.f32 %v1017, %v1020
      %vm1022 = vweird.f32 %v857
      %vm1023 = vweird.f32 %v1017
      %vm1024 = vmor %vm1022, %vm1023
      %v1025 = vsel %vm1024, %v1017, %v1021
      %v1026 = vand.u32 2147483647, %v857
      %vm1027 = vcmp.eq.f32.partialorder %v1026, 8.507059e+37
      %v1028 = vand.u32 %v857, 2147483648
      %v1029 = vor.u32 1.1754944e-38, %v1028
      %v1030 = vsel %vm1027, %v1029, %v1025
      %v1031 = vrcp.pop %v860
      %v1032 = vmul.f32 %v860, %v1031
      %v1033 = vsub.f32 1.0, %v1032
      %v1034 = vmul.f32 %v1031, %v1033
      %v1035 = vadd.f32 %v1031, %v1034
      %vm1036 = vweird.f32 %v860
      %vm1037 = vweird.f32 %v1031
      %vm1038 = vmor %vm1036, %vm1037
      %v1039 = vsel %vm1038, %v1031, %v1035
      %v1040 = vand.u32 2147483647, %v860
      %vm1041 = vcmp.eq.f32.partialorder %v1040, 8.507059e+37
      %v1042 = vand.u32 %v860, 2147483648
      %v1043 = vor.u32 1.1754944e-38, %v1042
      %v1044 = vsel %vm1041, %v1043, %v1039
      %v1045 = vrcp.pop %v863
      %v1046 = vmul.f32 %v863, %v1045
      %v1047 = vsub.f32 1.0, %v1046
      %v1048 = vmul.f32 %v1045, %v1047
      %v1049 = vadd.f32 %v1045, %v1048
      %vm1050 = vweird.f32 %v863
      %vm1051 = vweird.f32 %v1045
      %vm1052 = vmor %vm1050, %vm1051
      %v1053 = vsel %vm1052, %v1045, %v1049
      %v1054 = vand.u32 2147483647, %v863
      %vm1055 = vcmp.eq.f32.partialorder %v1054, 8.507059e+37
      %v1056 = vand.u32 %v863, 2147483648
      %v1057 = vor.u32 1.1754944e-38, %v1056
      %v1058 = vsel %vm1055, %v1057, %v1053
      %v1059 = vrcp.pop %v866
      %v1060 = vmul.f32 %v866, %v1059
      %v1061 = vsub.f32 1.0, %v1060
      %v1062 = vmul.f32 %v1059, %v1061
      %v1063 = vadd.f32 %v1059, %v1062
      %vm1064 = vweird.f32 %v866
      %vm1065 = vweird.f32 %v1059
      %vm1066 = vmor %vm1064, %vm1065
      %v1067 = vsel %vm1066, %v1059, %v1063
      %v1068 = vand.u32 2147483647, %v866
      %vm1069 = vcmp.eq.f32.partialorder %v1068, 8.507059e+37
      %v1070 = vand.u32 %v866, 2147483648
      %v1071 = vor.u32 1.1754944e-38, %v1070
      %v1072 = vsel %vm1069, %v1071, %v1067
      %v1073 = vrcp.pop %v869
      %v1074 = vmul.f32 %v869, %v1073
      %v1075 = vsub.f32 1.0, %v1074
      %v1076 = vmul.f32 %v1073, %v1075
      %v1077 = vadd.f32 %v1073, %v1076
      %vm1078 = vweird.f32 %v869
      %vm1079 = vweird.f32 %v1073
      %vm1080 = vmor %vm1078, %vm1079
      %v1081 = vsel %vm1080, %v1073, %v1077
      %v1082 = vand.u32 2147483647, %v869
      %vm1083 = vcmp.eq.f32.partialorder %v1082, 8.507059e+37
      %v1084 = vand.u32 %v869, 2147483648
      %v1085 = vor.u32 1.1754944e-38, %v1084
      %v1086 = vsel %vm1083, %v1085, %v1081
      %v1087 = vrcp.pop %v872
      %v1088 = vmul.f32 %v872, %v1087
      %v1089 = vsub.f32 1.0, %v1088
      %v1090 = vmul.f32 %v1087, %v1089
      %v1091 = vadd.f32 %v1087, %v1090
      %vm1092 = vweird.f32 %v872
      %vm1093 = vweird.f32 %v1087
      %vm1094 = vmor %vm1092, %vm1093
      %v1095 = vsel %vm1094, %v1087, %v1091
      %v1096 = vand.u32 2147483647, %v872
      %vm1097 = vcmp.eq.f32.partialorder %v1096, 8.507059e+37
      %v1098 = vand.u32 %v872, 2147483648
      %v1099 = vor.u32 1.1754944e-38, %v1098
      %v1100 = vsel %vm1097, %v1099, %v1095
      %v1101 = vrcp.pop %v875
      %v1102 = vmul.f32 %v875, %v1101
      %v1103 = vsub.f32 1.0, %v1102
      %v1104 = vmul.f32 %v1101, %v1103
      %v1105 = vadd.f32 %v1101, %v1104
      %vm1106 = vweird.f32 %v875
      %vm1107 = vweird.f32 %v1101
      %vm1108 = vmor %vm1106, %vm1107
      %v1109 = vsel %vm1108, %v1101, %v1105
      %v1110 = vand.u32 2147483647, %v875
      %vm1111 = vcmp.eq.f32.partialorder %v1110, 8.507059e+37
      %v1112 = vand.u32 %v875, 2147483648
      %v1113 = vor.u32 1.1754944e-38, %v1112
      %v1114 = vsel %vm1111, %v1113, %v1109
      %v1115 = vrcp.pop %v878
      %v1116 = vmul.f32 %v878, %v1115
      %v1117 = vsub.f32 1.0, %v1116
      %v1118 = vmul.f32 %v1115, %v1117
      %v1119 = vadd.f32 %v1115, %v1118
      %vm1120 = vweird.f32 %v878
      %vm1121 = vweird.f32 %v1115
      %vm1122 = vmor %vm1120, %vm1121
      %v1123 = vsel %vm1122, %v1115, %v1119
      %v1124 = vand.u32 2147483647, %v878
      %vm1125 = vcmp.eq.f32.partialorder %v1124, 8.507059e+37
      %v1126 = vand.u32 %v878, 2147483648
      %v1127 = vor.u32 1.1754944e-38, %v1126
      %v1128 = vsel %vm1125, %v1127, %v1123
      %v1129 = vrcp.pop %v881
      %v1130 = vmul.f32 %v881, %v1129
      %v1131 = vsub.f32 1.0, %v1130
      %v1132 = vmul.f32 %v1129, %v1131
      %v1133 = vadd.f32 %v1129, %v1132
      %vm1134 = vweird.f32 %v881
      %vm1135 = vweird.f32 %v1129
      %vm1136 = vmor %vm1134, %vm1135
      %v1137 = vsel %vm1136, %v1129, %v1133
      %v1138 = vand.u32 2147483647, %v881
      %vm1139 = vcmp.eq.f32.partialorder %v1138, 8.507059e+37
      %v1140 = vand.u32 %v881, 2147483648
      %v1141 = vor.u32 1.1754944e-38, %v1140
      %v1142 = vsel %vm1139, %v1141, %v1137
      %v1143 = vrcp.pop %v884
      %v1144 = vmul.f32 %v884, %v1143
      %v1145 = vsub.f32 1.0, %v1144
      %v1146 = vmul.f32 %v1143, %v1145
      %v1147 = vadd.f32 %v1143, %v1146
      %vm1148 = vweird.f32 %v884
      %vm1149 = vweird.f32 %v1143
      %vm1150 = vmor %vm1148, %vm1149
      %v1151 = vsel %vm1150, %v1143, %v1147
      %v1152 = vand.u32 2147483647, %v884
      %vm1153 = vcmp.eq.f32.partialorder %v1152, 8.507059e+37
      %v1154 = vand.u32 %v884, 2147483648
      %v1155 = vor.u32 1.1754944e-38, %v1154
      %v1156 = vsel %vm1153, %v1155, %v1151
      %v1157 = vrcp.pop %v887
      %v1158 = vmul.f32 %v887, %v1157
      %v1159 = vsub.f32 1.0, %v1158
      %v1160 = vmul.f32 %v1157, %v1159
      %v1161 = vadd.f32 %v1157, %v1160
      %vm1162 = vweird.f32 %v887
      %vm1163 = vweird.f32 %v1157
      %vm1164 = vmor %vm1162, %vm1163
      %v1165 = vsel %vm1164, %v1157, %v1161
      %v1166 = vand.u32 2147483647, %v887
      %vm1167 = vcmp.eq.f32.partialorder %v1166, 8.507059e+37
      %v1168 = vand.u32 %v887, 2147483648
      %v1169 = vor.u32 1.1754944e-38, %v1168
      %v1170 = vsel %vm1167, %v1169, %v1165
      %v1171 = vrcp.pop %v890
      %v1172 = vmul.f32 %v890, %v1171
      %v1173 = vsub.f32 1.0, %v1172
      %v1174 = vmul.f32 %v1171, %v1173
      %v1175 = vadd.f32 %v1171, %v1174
      %vm1176 = vweird.f32 %v890
      %vm1177 = vweird.f32 %v1171
      %vm1178 = vmor %vm1176, %vm1177
      %v1179 = vsel %vm1178, %v1171, %v1175
      %v1180 = vand.u32 2147483647, %v890
      %vm1181 = vcmp.eq.f32.partialorder %v1180, 8.507059e+37
      %v1182 = vand.u32 %v890, 2147483648
      %v1183 = vor.u32 1.1754944e-38, %v1182
      %v1184 = vsel %vm1181, %v1183, %v1179
      %v1185 = vrcp.pop %v893
      %v1186 = vmul.f32 %v893, %v1185
      %v1187 = vsub.f32 1.0, %v1186
      %v1188 = vmul.f32 %v1185, %v1187
      %v1189 = vadd.f32 %v1185, %v1188
      %vm1190 = vweird.f32 %v893
      %vm1191 = vweird.f32 %v1185
      %vm1192 = vmor %vm1190, %vm1191
      %v1193 = vsel %vm1192, %v1185, %v1189
      %v1194 = vand.u32 2147483647, %v893
      %vm1195 = vcmp.eq.f32.partialorder %v1194, 8.507059e+37
      %v1196 = vand.u32 %v893, 2147483648
      %v1197 = vor.u32 1.1754944e-38, %v1196
      %v1198 = vsel %vm1195, %v1197, %v1193
      %v1199 = vrcp.pop %v896
      %v1200 = vmul.f32 %v896, %v1199
      %v1201 = vsub.f32 1.0, %v1200
      %v1202 = vmul.f32 %v1199, %v1201
      %v1203 = vadd.f32 %v1199, %v1202
      %vm1204 = vweird.f32 %v896
      %vm1205 = vweird.f32 %v1199
      %vm1206 = vmor %vm1204, %vm1205
      %v1207 = vsel %vm1206, %v1199, %v1203
      %v1208 = vand.u32 2147483647, %v896
      %vm1209 = vcmp.eq.f32.partialorder %v1208, 8.507059e+37
      %v1210 = vand.u32 %v896, 2147483648
      %v1211 = vor.u32 1.1754944e-38, %v1210
      %v1212 = vsel %vm1209, %v1211, %v1207
      %v1213 = vrcp.pop %v899
      %v1214 = vmul.f32 %v899, %v1213
      %v1215 = vsub.f32 1.0, %v1214
      %v1216 = vmul.f32 %v1213, %v1215
      %v1217 = vadd.f32 %v1213, %v1216
      %vm1218 = vweird.f32 %v899
      %vm1219 = vweird.f32 %v1213
      %vm1220 = vmor %vm1218, %vm1219
      %v1221 = vsel %vm1220, %v1213, %v1217
      %v1222 = vand.u32 2147483647, %v899
      %vm1223 = vcmp.eq.f32.partialorder %v1222, 8.507059e+37
      %v1224 = vand.u32 %v899, 2147483648
      %v1225 = vor.u32 1.1754944e-38, %v1224
      %v1226 = vsel %vm1223, %v1225, %v1221
      %v1227 = vrcp.pop %v902
      %v1228 = vmul.f32 %v902, %v1227
      %v1229 = vsub.f32 1.0, %v1228
      %v1230 = vmul.f32 %v1227, %v1229
      %v1231 = vadd.f32 %v1227, %v1230
      %vm1232 = vweird.f32 %v902
      %vm1233 = vweird.f32 %v1227
      %vm1234 = vmor %vm1232, %vm1233
      %v1235 = vsel %vm1234, %v1227, %v1231
      %v1236 = vand.u32 2147483647, %v902
      %vm1237 = vcmp.eq.f32.partialorder %v1236, 8.507059e+37
      %v1238 = vand.u32 %v902, 2147483648
      %v1239 = vor.u32 1.1754944e-38, %v1238
      %v1240 = vsel %vm1237, %v1239, %v1235
      %v1241 = vrcp.pop %v905
      %v1242 = vmul.f32 %v905, %v1241
      %v1243 = vsub.f32 1.0, %v1242
      %v1244 = vmul.f32 %v1241, %v1243
      %v1245 = vadd.f32 %v1241, %v1244
      %vm1246 = vweird.f32 %v905
      %vm1247 = vweird.f32 %v1241
      %vm1248 = vmor %vm1246, %vm1247
      %v1249 = vsel %vm1248, %v1241, %v1245
      %v1250 = vand.u32 2147483647, %v905
      %vm1251 = vcmp.eq.f32.partialorder %v1250, 8.507059e+37
      %v1252 = vand.u32 %v905, 2147483648
      %v1253 = vor.u32 1.1754944e-38, %v1252
      %v1254 = vsel %vm1251, %v1253, %v1249
      %v1255 = vrcp.pop %v908
      %v1256 = vmul.f32 %v908, %v1255
      %v1257 = vsub.f32 1.0, %v1256
      %v1258 = vmul.f32 %v1255, %v1257
      %v1259 = vadd.f32 %v1255, %v1258
      %vm1260 = vweird.f32 %v908
      %vm1261 = vweird.f32 %v1255
      %vm1262 = vmor %vm1260, %vm1261
      %v1263 = vsel %vm1262, %v1255, %v1259
      %v1264 = vand.u32 2147483647, %v908
      %vm1265 = vcmp.eq.f32.partialorder %v1264, 8.507059e+37
      %v1266 = vand.u32 %v908, 2147483648
      %v1267 = vor.u32 1.1754944e-38, %v1266
      %v1268 = vsel %vm1265, %v1267, %v1263
      %v1269 = vrcp.pop %v911
      %v1270 = vmul.f32 %v911, %v1269
      %v1271 = vsub.f32 1.0, %v1270
      %v1272 = vmul.f32 %v1269, %v1271
      %v1273 = vadd.f32 %v1269, %v1272
      %vm1274 = vweird.f32 %v911
      %vm1275 = vweird.f32 %v1269
      %vm1276 = vmor %vm1274, %vm1275
      %v1277 = vsel %vm1276, %v1269, %v1273
      %v1278 = vand.u32 2147483647, %v911
      %vm1279 = vcmp.eq.f32.partialorder %v1278, 8.507059e+37
      %v1280 = vand.u32 %v911, 2147483648
      %v1281 = vor.u32 1.1754944e-38, %v1280
      %v1282 = vsel %vm1279, %v1281, %v1277
      %v1283 = vrcp.pop %v914
      %v1284 = vmul.f32 %v914, %v1283
      %v1285 = vsub.f32 1.0, %v1284
      %v1286 = vmul.f32 %v1283, %v1285
      %v1287 = vadd.f32 %v1283, %v1286
      %vm1288 = vweird.f32 %v914
      %vm1289 = vweird.f32 %v1283
      %vm1290 = vmor %vm1288, %vm1289
      %v1291 = vsel %vm1290, %v1283, %v1287
      %v1292 = vand.u32 2147483647, %v914
      %vm1293 = vcmp.eq.f32.partialorder %v1292, 8.507059e+37
      %v1294 = vand.u32 %v914, 2147483648
      %v1295 = vor.u32 1.1754944e-38, %v1294
      %v1296 = vsel %vm1293, %v1295, %v1291
      %v1297 = vrcp.pop %v917
      %v1298 = vmul.f32 %v917, %v1297
      %v1299 = vsub.f32 1.0, %v1298
      %v1300 = vmul.f32 %v1297, %v1299
      %v1301 = vadd.f32 %v1297, %v1300
      %vm1302 = vweird.f32 %v917
      %vm1303 = vweird.f32 %v1297
      %vm1304 = vmor %vm1302, %vm1303
      %v1305 = vsel %vm1304, %v1297, %v1301
      %v1306 = vand.u32 2147483647, %v917
      %vm1307 = vcmp.eq.f32.partialorder %v1306, 8.507059e+37
      %v1308 = vand.u32 %v917, 2147483648
      %v1309 = vor.u32 1.1754944e-38, %v1308
      %v1310 = vsel %vm1307, %v1309, %v1305
      %v1311 = vrcp.pop %v920
      %v1312 = vmul.f32 %v920, %v1311
      %v1313 = vsub.f32 1.0, %v1312
      %v1314 = vmul.f32 %v1311, %v1313
      %v1315 = vadd.f32 %v1311, %v1314
      %vm1316 = vweird.f32 %v920
      %vm1317 = vweird.f32 %v1311
      %vm1318 = vmor %vm1316, %vm1317
      %v1319 = vsel %vm1318, %v1311, %v1315
      %v1320 = vand.u32 2147483647, %v920
      %vm1321 = vcmp.eq.f32.partialorder %v1320, 8.507059e+37
      %v1322 = vand.u32 %v920, 2147483648
      %v1323 = vor.u32 1.1754944e-38, %v1322
      %v1324 = vsel %vm1321, %v1323, %v1319
      %v1325 = vrcp.pop %v923
      %v1326 = vmul.f32 %v923, %v1325
      %v1327 = vsub.f32 1.0, %v1326
      %v1328 = vmul.f32 %v1325, %v1327
      %v1329 = vadd.f32 %v1325, %v1328
      %vm1330 = vweird.f32 %v923
      %vm1331 = vweird.f32 %v1325
      %vm1332 = vmor %vm1330, %vm1331
      %v1333 = vsel %vm1332, %v1325, %v1329
      %v1334 = vand.u32 2147483647, %v923
      %vm1335 = vcmp.eq.f32.partialorder %v1334, 8.507059e+37
      %v1336 = vand.u32 %v923, 2147483648
      %v1337 = vor.u32 1.1754944e-38, %v1336
      %v1338 = vsel %vm1335, %v1337, %v1333
      %v1339 = vrcp.pop %v926
      %v1340 = vmul.f32 %v926, %v1339
      %v1341 = vsub.f32 1.0, %v1340
      %v1342 = vmul.f32 %v1339, %v1341
      %v1343 = vadd.f32 %v1339, %v1342
      %vm1344 = vweird.f32 %v926
      %vm1345 = vweird.f32 %v1339
      %vm1346 = vmor %vm1344, %vm1345
      %v1347 = vsel %vm1346, %v1339, %v1343
      %v1348 = vand.u32 2147483647, %v926
      %vm1349 = vcmp.eq.f32.partialorder %v1348, 8.507059e+37
      %v1350 = vand.u32 %v926, 2147483648
      %v1351 = vor.u32 1.1754944e-38, %v1350
      %v1352 = vsel %vm1349, %v1351, %v1347
      %v1353 = vrcp.pop %v929
      %v1354 = vmul.f32 %v929, %v1353
      %v1355 = vsub.f32 1.0, %v1354
      %v1356 = vmul.f32 %v1353, %v1355
      %v1357 = vadd.f32 %v1353, %v1356
      %vm1358 = vweird.f32 %v929
      %vm1359 = vweird.f32 %v1353
      %vm1360 = vmor %vm1358, %vm1359
      %v1361 = vsel %vm1360, %v1353, %v1357
      %v1362 = vand.u32 2147483647, %v929
      %vm1363 = vcmp.eq.f32.partialorder %v1362, 8.507059e+37
      %v1364 = vand.u32 %v929, 2147483648
      %v1365 = vor.u32 1.1754944e-38, %v1364
      %v1366 = vsel %vm1363, %v1365, %v1361
      %v1367 = vrcp.pop %v932
      %v1368 = vmul.f32 %v932, %v1367
      %v1369 = vsub.f32 1.0, %v1368
      %v1370 = vmul.f32 %v1367, %v1369
      %v1371 = vadd.f32 %v1367, %v1370
      %vm1372 = vweird.f32 %v932
      %vm1373 = vweird.f32 %v1367
      %vm1374 = vmor %vm1372, %vm1373
      %v1375 = vsel %vm1374, %v1367, %v1371
      %v1376 = vand.u32 2147483647, %v932
      %vm1377 = vcmp.eq.f32.partialorder %v1376, 8.507059e+37
      %v1378 = vand.u32 %v932, 2147483648
      %v1379 = vor.u32 1.1754944e-38, %v1378
      %v1380 = vsel %vm1377, %v1379, %v1375
      %v1381 = vmul.f32 %v710, %v946
      %v1382 = vmul.f32 %v712, %v946
      %v1383 = vmul.f32 %v714, %v960
      %v1384 = vmul.f32 %v716, %v960
      %v1385 = vmul.f32 %v718, %v974
      %v1386 = vmul.f32 %v720, %v974
      %v1387 = vmul.f32 %v722, %v988
      %v1388 = vmul.f32 %v724, %v988
      %v1389 = vmul.f32 %v726, %v1002
      %v1390 = vmul.f32 %v728, %v1002
      %v1391 = vmul.f32 %v730, %v1016
      %v1392 = vmul.f32 %v732, %v1016
      %v1393 = vmul.f32 %v734, %v1030
      %v1394 = vmul.f32 %v736, %v1030
      %v1395 = vmul.f32 %v738, %v1044
      %v1396 = vmul.f32 %v740, %v1044
      %v1397 = vmul.f32 %v742, %v1058
      %v1398 = vmul.f32 %v744, %v1058
      %v1399 = vmul.f32 %v746, %v1072
      %v1400 = vmul.f32 %v748, %v1072
      %v1401 = vmul.f32 %v750, %v1086
      %v1402 = vmul.f32 %v752, %v1086
      %v1403 = vmul.f32 %v754, %v1100
      %v1404 = vmul.f32 %v756, %v1100
      %v1405 = vmul.f32 %v758, %v1114
      %v1406 = vmul.f32 %v760, %v1114
      %v1407 = vmul.f32 %v762, %v1128
      %v1408 = vmul.f32 %v764, %v1128
      %v1409 = vmul.f32 %v766, %v1142
      %v1410 = vmul.f32 %v768, %v1142
      %v1411 = vmul.f32 %v770, %v1156
      %v1412 = vmul.f32 %v772, %v1156
      %v1413 = vmul.f32 %v774, %v1170
      %v1414 = vmul.f32 %v776, %v1170
      %v1415 = vmul.f32 %v778, %v1184
      %v1416 = vmul.f32 %v780, %v1184
      %v1417 = vmul.f32 %v782, %v1198
      %v1418 = vmul.f32 %v784, %v1198
      %v1419 = vmul.f32 %v786, %v1212
      %v1420 = vmul.f32 %v788, %v1212
      %v1421 = vmul.f32 %v790, %v1226
      %v1422 = vmul.f32 %v792, %v1226
      %v1423 = vmul.f32 %v794, %v1240
      %v1424 = vmul.f32 %v796, %v1240
      %v1425 = vmul.f32 %v798, %v1254
      %v1426 = vmul.f32 %v800, %v1254
      %v1427 = vmul.f32 %v802, %v1268
      %v1428 = vmul.f32 %v804, %v1268
      %v1429 = vmul.f32 %v806, %v1282
      %v1430 = vmul.f32 %v808, %v1282
      %v1431 = vmul.f32 %v810, %v1296
      %v1432 = vmul.f32 %v812, %v1296
      %v1433 = vmul.f32 %v814, %v1310
      %v1434 = vmul.f32 %v816, %v1310
      %v1435 = vmul.f32 %v818, %v1324
      %v1436 = vmul.f32 %v820, %v1324
      %v1437 = vmul.f32 %v822, %v1338
      %v1438 = vmul.f32 %v824, %v1338
      %v1439 = vmul.f32 %v826, %v1352
      %v1440 = vmul.f32 %v828, %v1352
      %v1441 = vmul.f32 %v830, %v1366
      %v1442 = vmul.f32 %v832, %v1366
      %v1443 = vmul.f32 %v834, %v1380
      %v1444 = vmul.f32 %v836, %v1380
      %1445 = vmatpush.xpose.msra.mxu0 %v1411
      %1446 = vmatpush.xpose.msra.mxu0 %v1409
      %1447 = vmatpush.xpose.msra.mxu0 %v1407
      %1448 = vmatpush.xpose.msra.mxu0 %v1405
      %1449 = vmatpush.xpose.msra.mxu0 %v1403
      %1450 = vmatpush.xpose.msra.mxu0 %v1401
      %1451 = vmatpush.xpose.msra.mxu0 %v1399
      %1452 = vmatpush.xpose.msra.mxu0 %v1397
      %1453 = vmatpush.xpose.msra.mxu0 %v1395
      %1454 = vmatpush.xpose.msra.mxu0 %v1393
      %1455 = vmatpush.xpose.msra.mxu0 %v1391
      %1456 = vmatpush.xpose.msra.mxu0 %v1389
      %1457 = vmatpush.xpose.msra.mxu0 %v1387
      %1458 = vmatpush.xpose.msra.mxu0 %v1385
      %1459 = vmatpush.xpose.msra.mxu0 %v1383
      %1460 = vmatpush.xpose.msra.mxu0 %v1381
      %1461 = vmatmul.f32.gmra.mxu0 %v195
      %v1462 = vpop.f32.mrf.mxu0
      %v1463 = vadd.f32 0.0, %v1462
      %1464 = vmatmul.f32.gmra.mxu0 %v197
      %v1465 = vpop.f32.mrf.mxu0
      %v1466 = vadd.f32 0.0, %v1465
      %1467 = vmatmul.f32.gmra.mxu0 %v199
      %v1468 = vpop.f32.mrf.mxu0
      %v1469 = vadd.f32 0.0, %v1468
      %1470 = vmatmul.f32.gmra.mxu0 %v201
      %v1471 = vpop.f32.mrf.mxu0
      %v1472 = vadd.f32 0.0, %v1471
      %1473 = vmatmul.f32.gmra.mxu0 %v203
      %v1474 = vpop.f32.mrf.mxu0
      %v1475 = vadd.f32 0.0, %v1474
      %1476 = vmatmul.f32.gmra.mxu0 %v205
      %v1477 = vpop.f32.mrf.mxu0
      %v1478 = vadd.f32 0.0, %v1477
      %1479 = vmatmul.f32.gmra.mxu0 %v207
      %v1480 = vpop.f32.mrf.mxu0
      %v1481 = vadd.f32 0.0, %v1480
      %1482 = vmatmul.f32.gmra.mxu0 %v209
      %v1483 = vpop.f32.mrf.mxu0
      %v1484 = vadd.f32 0.0, %v1483
      %1485 = vmatmul.f32.gmra.mxu0 %v211
      %v1486 = vpop.f32.mrf.mxu0
      %v1487 = vadd.f32 0.0, %v1486
      %1488 = vmatmul.f32.gmra.mxu0 %v213
      %v1489 = vpop.f32.mrf.mxu0
      %v1490 = vadd.f32 0.0, %v1489
      %1491 = vmatmul.f32.gmra.mxu0 %v215
      %v1492 = vpop.f32.mrf.mxu0
      %v1493 = vadd.f32 0.0, %v1492
      %1494 = vmatmul.f32.gmra.mxu0 %v217
      %v1495 = vpop.f32.mrf.mxu0
      %v1496 = vadd.f32 0.0, %v1495
      %1497 = vmatmul.f32.gmra.mxu0 %v219
      %v1498 = vpop.f32.mrf.mxu0
      %v1499 = vadd.f32 0.0, %v1498
      %1500 = vmatmul.f32.gmra.mxu0 %v221
      %v1501 = vpop.f32.mrf.mxu0
      %v1502 = vadd.f32 0.0, %v1501
      %1503 = vmatmul.f32.gmra.mxu0 %v223
      %v1504 = vpop.f32.mrf.mxu0
      %v1505 = vadd.f32 0.0, %v1504
      %1506 = vmatmul.f32.gmra.mxu0 %v225
      %v1507 = vpop.f32.mrf.mxu0
      %v1508 = vadd.f32 0.0, %v1507
      %1509 = vdwg.mxu0
      %1510 = vmatpush.xpose.msra.mxu0 %v1412
      %1511 = vmatpush.xpose.msra.mxu0 %v1410
      %1512 = vmatpush.xpose.msra.mxu0 %v1408
      %1513 = vmatpush.xpose.msra.mxu0 %v1406
      %1514 = vmatpush.xpose.msra.mxu0 %v1404
      %1515 = vmatpush.xpose.msra.mxu0 %v1402
      %1516 = vmatpush.xpose.msra.mxu0 %v1400
      %1517 = vmatpush.xpose.msra.mxu0 %v1398
      %1518 = vmatpush.xpose.msra.mxu0 %v1396
      %1519 = vmatpush.xpose.msra.mxu0 %v1394
      %1520 = vmatpush.xpose.msra.mxu0 %v1392
      %1521 = vmatpush.xpose.msra.mxu0 %v1390
      %1522 = vmatpush.xpose.msra.mxu0 %v1388
      %1523 = vmatpush.xpose.msra.mxu0 %v1386
      %1524 = vmatpush.xpose.msra.mxu0 %v1384
      %1525 = vmatpush.xpose.msra.mxu0 %v1382
      %1526 = vmatmul.f32.gmra.mxu0 %v196
      %v1527 = vpop.f32.mrf.mxu0
      %v1528 = vadd.f32 %v1463, %v1527
      %1529 = vmatmul.f32.gmra.mxu0 %v198
      %v1530 = vpop.f32.mrf.mxu0
      %v1531 = vadd.f32 %v1466, %v1530
      %1532 = vmatmul.f32.gmra.mxu0 %v200
      %v1533 = vpop.f32.mrf.mxu0
      %v1534 = vadd.f32 %v1469, %v1533
      %1535 = vmatmul.f32.gmra.mxu0 %v202
      %v1536 = vpop.f32.mrf.mxu0
      %v1537 = vadd.f32 %v1472, %v1536
      %1538 = vmatmul.f32.gmra.mxu0 %v204
      %v1539 = vpop.f32.mrf.mxu0
      %v1540 = vadd.f32 %v1475, %v1539
      %1541 = vmatmul.f32.gmra.mxu0 %v206
      %v1542 = vpop.f32.mrf.mxu0
      %v1543 = vadd.f32 %v1478, %v1542
      %1544 = vmatmul.f32.gmra.mxu0 %v208
      %v1545 = vpop.f32.mrf.mxu0
      %v1546 = vadd.f32 %v1481, %v1545
      %1547 = vmatmul.f32.gmra.mxu0 %v210
      %v1548 = vpop.f32.mrf.mxu0
      %v1549 = vadd.f32 %v1484, %v1548
      %1550 = vmatmul.f32.gmra.mxu0 %v212
      %v1551 = vpop.f32.mrf.mxu0
      %v1552 = vadd.f32 %v1487, %v1551
      %1553 = vmatmul.f32.gmra.mxu0 %v214
      %v1554 = vpop.f32.mrf.mxu0
      %v1555 = vadd.f32 %v1490, %v1554
      %1556 = vmatmul.f32.gmra.mxu0 %v216
      %v1557 = vpop.f32.mrf.mxu0
      %v1558 = vadd.f32 %v1493, %v1557
      %1559 = vmatmul.f32.gmra.mxu0 %v218
      %v1560 = vpop.f32.mrf.mxu0
      %v1561 = vadd.f32 %v1496, %v1560
      %1562 = vmatmul.f32.gmra.mxu0 %v220
      %v1563 = vpop.f32.mrf.mxu0
      %v1564 = vadd.f32 %v1499, %v1563
      %1565 = vmatmul.f32.gmra.mxu0 %v222
      %v1566 = vpop.f32.mrf.mxu0
      %v1567 = vadd.f32 %v1502, %v1566
      %1568 = vmatmul.f32.gmra.mxu0 %v224
      %v1569 = vpop.f32.mrf.mxu0
      %v1570 = vadd.f32 %v1505, %v1569
      %1571 = vmatmul.f32.gmra.mxu0 %v226
      %v1572 = vpop.f32.mrf.mxu0
      %v1573 = vadd.f32 %v1508, %v1572
      %1574 = vdwg.mxu0
      %1575 = vmatpush.xpose.msra.mxu0 %v1443
      %1576 = vmatpush.xpose.msra.mxu0 %v1441
      %1577 = vmatpush.xpose.msra.mxu0 %v1439
      %1578 = vmatpush.xpose.msra.mxu0 %v1437
      %1579 = vmatpush.xpose.msra.mxu0 %v1435
      %1580 = vmatpush.xpose.msra.mxu0 %v1433
      %1581 = vmatpush.xpose.msra.mxu0 %v1431
      %1582 = vmatpush.xpose.msra.mxu0 %v1429
      %1583 = vmatpush.xpose.msra.mxu0 %v1427
      %1584 = vmatpush.xpose.msra.mxu0 %v1425
      %1585 = vmatpush.xpose.msra.mxu0 %v1423
      %1586 = vmatpush.xpose.msra.mxu0 %v1421
      %1587 = vmatpush.xpose.msra.mxu0 %v1419
      %1588 = vmatpush.xpose.msra.mxu0 %v1417
      %1589 = vmatpush.xpose.msra.mxu0 %v1415
      %1590 = vmatpush.xpose.msra.mxu0 %v1413
      %1591 = vmatmul.f32.gmra.mxu0 %v195
      %v1592 = vpop.f32.mrf.mxu0
      %v1593 = vadd.f32 0.0, %v1592
      %1594 = vmatmul.f32.gmra.mxu0 %v197
      %v1595 = vpop.f32.mrf.mxu0
      %v1596 = vadd.f32 0.0, %v1595
      %1597 = vmatmul.f32.gmra.mxu0 %v199
      %v1598 = vpop.f32.mrf.mxu0
      %v1599 = vadd.f32 0.0, %v1598
      %1600 = vmatmul.f32.gmra.mxu0 %v201
      %v1601 = vpop.f32.mrf.mxu0
      %v1602 = vadd.f32 0.0, %v1601
      %1603 = vmatmul.f32.gmra.mxu0 %v203
      %v1604 = vpop.f32.mrf.mxu0
      %v1605 = vadd.f32 0.0, %v1604
      %1606 = vmatmul.f32.gmra.mxu0 %v205
      %v1607 = vpop.f32.mrf.mxu0
      %v1608 = vadd.f32 0.0, %v1607
      %1609 = vmatmul.f32.gmra.mxu0 %v207
      %v1610 = vpop.f32.mrf.mxu0
      %v1611 = vadd.f32 0.0, %v1610
      %1612 = vmatmul.f32.gmra.mxu0 %v209
      %v1613 = vpop.f32.mrf.mxu0
      %v1614 = vadd.f32 0.0, %v1613
      %1615 = vmatmul.f32.gmra.mxu0 %v211
      %v1616 = vpop.f32.mrf.mxu0
      %v1617 = vadd.f32 0.0, %v1616
      %1618 = vmatmul.f32.gmra.mxu0 %v213
      %v1619 = vpop.f32.mrf.mxu0
      %v1620 = vadd.f32 0.0, %v1619
      %1621 = vmatmul.f32.gmra.mxu0 %v215
      %v1622 = vpop.f32.mrf.mxu0
      %v1623 = vadd.f32 0.0, %v1622
      %1624 = vmatmul.f32.gmra.mxu0 %v217
      %v1625 = vpop.f32.mrf.mxu0
      %v1626 = vadd.f32 0.0, %v1625
      %1627 = vmatmul.f32.gmra.mxu0 %v219
      %v1628 = vpop.f32.mrf.mxu0
      %v1629 = vadd.f32 0.0, %v1628
      %1630 = vmatmul.f32.gmra.mxu0 %v221
      %v1631 = vpop.f32.mrf.mxu0
      %v1632 = vadd.f32 0.0, %v1631
      %1633 = vmatmul.f32.gmra.mxu0 %v223
      %v1634 = vpop.f32.mrf.mxu0
      %v1635 = vadd.f32 0.0, %v1634
      %1636 = vmatmul.f32.gmra.mxu0 %v225
      %v1637 = vpop.f32.mrf.mxu0
      %v1638 = vadd.f32 0.0, %v1637
      %1639 = vdwg.mxu0
      %1640 = vmatpush.xpose.msra.mxu0 %v1444
      %1641 = vmatpush.xpose.msra.mxu0 %v1442
      %1642 = vmatpush.xpose.msra.mxu0 %v1440
      %1643 = vmatpush.xpose.msra.mxu0 %v1438
      %1644 = vmatpush.xpose.msra.mxu0 %v1436
      %1645 = vmatpush.xpose.msra.mxu0 %v1434
      %1646 = vmatpush.xpose.msra.mxu0 %v1432
      %1647 = vmatpush.xpose.msra.mxu0 %v1430
      %1648 = vmatpush.xpose.msra.mxu0 %v1428
      %1649 = vmatpush.xpose.msra.mxu0 %v1426
      %1650 = vmatpush.xpose.msra.mxu0 %v1424
      %1651 = vmatpush.xpose.msra.mxu0 %v1422
      %1652 = vmatpush.xpose.msra.mxu0 %v1420
      %1653 = vmatpush.xpose.msra.mxu0 %v1418
      %1654 = vmatpush.xpose.msra.mxu0 %v1416
      %1655 = vmatpush.xpose.msra.mxu0 %v1414
      %1656 = vmatmul.f32.gmra.mxu0 %v196
      %v1657 = vpop.f32.mrf.mxu0
      %v1658 = vadd.f32 %v1593, %v1657
      %1659 = vmatmul.f32.gmra.mxu0 %v198
      %v1660 = vpop.f32.mrf.mxu0
      %v1661 = vadd.f32 %v1596, %v1660
      %1662 = vmatmul.f32.gmra.mxu0 %v200
      %v1663 = vpop.f32.mrf.mxu0
      %v1664 = vadd.f32 %v1599, %v1663
      %1665 = vmatmul.f32.gmra.mxu0 %v202
      %v1666 = vpop.f32.mrf.mxu0
      %v1667 = vadd.f32 %v1602, %v1666
      %1668 = vmatmul.f32.gmra.mxu0 %v204
      %v1669 = vpop.f32.mrf.mxu0
      %v1670 = vadd.f32 %v1605, %v1669
      %1671 = vmatmul.f32.gmra.mxu0 %v206
      %v1672 = vpop.f32.mrf.mxu0
      %v1673 = vadd.f32 %v1608, %v1672
      %1674 = vmatmul.f32.gmra.mxu0 %v208
      %v1675 = vpop.f32.mrf.mxu0
      %v1676 = vadd.f32 %v1611, %v1675
      %1677 = vmatmul.f32.gmra.mxu0 %v210
      %v1678 = vpop.f32.mrf.mxu0
      %v1679 = vadd.f32 %v1614, %v1678
      %1680 = vmatmul.f32.gmra.mxu0 %v212
      %v1681 = vpop.f32.mrf.mxu0
      %v1682 = vadd.f32 %v1617, %v1681
      %1683 = vmatmul.f32.gmra.mxu0 %v214
      %v1684 = vpop.f32.mrf.mxu0
      %v1685 = vadd.f32 %v1620, %v1684
      %1686 = vmatmul.f32.gmra.mxu0 %v216
      %v1687 = vpop.f32.mrf.mxu0
      %v1688 = vadd.f32 %v1623, %v1687
      %1689 = vmatmul.f32.gmra.mxu0 %v218
      %v1690 = vpop.f32.mrf.mxu0
      %v1691 = vadd.f32 %v1626, %v1690
      %1692 = vmatmul.f32.gmra.mxu0 %v220
      %v1693 = vpop.f32.mrf.mxu0
      %v1694 = vadd.f32 %v1629, %v1693
      %1695 = vmatmul.f32.gmra.mxu0 %v222
      %v1696 = vpop.f32.mrf.mxu0
      %v1697 = vadd.f32 %v1632, %v1696
      %1698 = vmatmul.f32.gmra.mxu0 %v224
      %v1699 = vpop.f32.mrf.mxu0
      %v1700 = vadd.f32 %v1635, %v1699
      %1701 = vmatmul.f32.gmra.mxu0 %v226
      %v1702 = vpop.f32.mrf.mxu0
      %v1703 = vadd.f32 %v1638, %v1702
      %1704 = vdwg.mxu0
      %s1705 = sld [smem:[#allocation2]]
      %v1706 = vadd.f32 %v195, %v227
      %v1707 = vadd.f32 %v196, %v228
      %v1708 = vadd.f32 %v197, %v229
      %v1709 = vadd.f32 %v198, %v230
      %v1710 = vadd.f32 %v199, %v231
      %v1711 = vadd.f32 %v200, %v232
      %v1712 = vadd.f32 %v201, %v233
      %v1713 = vadd.f32 %v202, %v234
      %v1714 = vadd.f32 %v203, %v235
      %v1715 = vadd.f32 %v204, %v236
      %v1716 = vadd.f32 %v205, %v237
      %v1717 = vadd.f32 %v206, %v238
      %v1718 = vadd.f32 %v207, %v239
      %v1719 = vadd.f32 %v208, %v240
      %v1720 = vadd.f32 %v209, %v241
      %v1721 = vadd.f32 %v210, %v242
      %v1722 = vadd.f32 %v211, %v243
      %v1723 = vadd.f32 %v212, %v244
      %v1724 = vadd.f32 %v213, %v245
      %v1725 = vadd.f32 %v214, %v246
      %v1726 = vadd.f32 %v215, %v247
      %v1727 = vadd.f32 %v216, %v248
      %v1728 = vadd.f32 %v217, %v249
      %v1729 = vadd.f32 %v218, %v250
      %v1730 = vadd.f32 %v219, %v251
      %v1731 = vadd.f32 %v220, %v252
      %v1732 = vadd.f32 %v221, %v253
      %v1733 = vadd.f32 %v222, %v254
      %v1734 = vadd.f32 %v223, %v255
      %v1735 = vadd.f32 %v224, %v256
      %v1736 = vadd.f32 %v225, %v257
      %v1737 = vadd.f32 %v226, %v258
      %v1738 = vstv %s1705
      %v1739 = vmul.f32 %v1738, %v1528
      %v1740 = vmul.f32 %v1738, %v1658
      %v1741 = vmul.f32 %v1738, %v1531
      %v1742 = vmul.f32 %v1738, %v1661
      %v1743 = vmul.f32 %v1738, %v1534
      %v1744 = vmul.f32 %v1738, %v1664
      %v1745 = vmul.f32 %v1738, %v1537
      %v1746 = vmul.f32 %v1738, %v1667
      %v1747 = vmul.f32 %v1738, %v1540
      %v1748 = vmul.f32 %v1738, %v1670
      %v1749 = vmul.f32 %v1738, %v1543
      %v1750 = vmul.f32 %v1738, %v1673
      %v1751 = vmul.f32 %v1738, %v1546
      %v1752 = vmul.f32 %v1738, %v1676
      %v1753 = vmul.f32 %v1738, %v1549
      %v1754 = vmul.f32 %v1738, %v1679
      %v1755 = vmul.f32 %v1738, %v1552
      %v1756 = vmul.f32 %v1738, %v1682
      %v1757 = vmul.f32 %v1738, %v1555
      %v1758 = vmul.f32 %v1738, %v1685
      %v1759 = vmul.f32 %v1738, %v1558
      %v1760 = vmul.f32 %v1738, %v1688
      %v1761 = vmul.f32 %v1738, %v1561
      %v1762 = vmul.f32 %v1738, %v1691
      %v1763 = vmul.f32 %v1738, %v1564
      %v1764 = vmul.f32 %v1738, %v1694
      %v1765 = vmul.f32 %v1738, %v1567
      %v1766 = vmul.f32 %v1738, %v1697
      %v1767 = vmul.f32 %v1738, %v1570
      %v1768 = vmul.f32 %v1738, %v1700
      %v1769 = vmul.f32 %v1738, %v1573
      %v1770 = vmul.f32 %v1738, %v1703
      %v1771 = vadd.f32 %v1706, %v1739
      %v1772 = vadd.f32 %v1707, %v1740
      %v1773 = vadd.f32 %v1708, %v1741
      %v1774 = vadd.f32 %v1709, %v1742
      %v1775 = vadd.f32 %v1710, %v1743
      %v1776 = vadd.f32 %v1711, %v1744
      %v1777 = vadd.f32 %v1712, %v1745
      %v1778 = vadd.f32 %v1713, %v1746
      %v1779 = vadd.f32 %v1714, %v1747
      %v1780 = vadd.f32 %v1715, %v1748
      %v1781 = vadd.f32 %v1716, %v1749
      %v1782 = vadd.f32 %v1717, %v1750
      %v1783 = vadd.f32 %v1718, %v1751
      %v1784 = vadd.f32 %v1719, %v1752
      %v1785 = vadd.f32 %v1720, %v1753
      %v1786 = vadd.f32 %v1721, %v1754
      %v1787 = vadd.f32 %v1722, %v1755
      %v1788 = vadd.f32 %v1723, %v1756
      %v1789 = vadd.f32 %v1724, %v1757
      %v1790 = vadd.f32 %v1725, %v1758
      %v1791 = vadd.f32 %v1726, %v1759
      %v1792 = vadd.f32 %v1727, %v1760
      %v1793 = vadd.f32 %v1728, %v1761
      %v1794 = vadd.f32 %v1729, %v1762
      %v1795 = vadd.f32 %v1730, %v1763
      %v1796 = vadd.f32 %v1731, %v1764
      %v1797 = vadd.f32 %v1732, %v1765
      %v1798 = vadd.f32 %v1733, %v1766
      %v1799 = vadd.f32 %v1734, %v1767
      %v1800 = vadd.f32 %v1735, %v1768
      %v1801 = vadd.f32 %v1736, %v1769
      %v1802 = vadd.f32 %v1737, %v1770
      %1803 = vst [vmem:[%s193] sm:$0xff] %v1771
      %1804 = vst [vmem:[%s193 + $0x8] sm:$0xff] %v1772
      %1805 = vst [vmem:[%s193 + $0x10] sm:$0xff] %v1773
      %1806 = vst [vmem:[%s193 + $0x18] sm:$0xff] %v1774
      %1807 = vst [vmem:[%s193 + $0x20] sm:$0xff] %v1775
      %1808 = vst [vmem:[%s193 + $0x28] sm:$0xff] %v1776
      %1809 = vst [vmem:[%s193 + $0x30] sm:$0xff] %v1777
      %1810 = vst [vmem:[%s193 + $0x38] sm:$0xff] %v1778
      %1811 = vst [vmem:[%s193 + $0x40] sm:$0xff] %v1779
      %1812 = vst [vmem:[%s193 + $0x48] sm:$0xff] %v1780
      %1813 = vst [vmem:[%s193 + $0x50] sm:$0xff] %v1781
      %1814 = vst [vmem:[%s193 + $0x58] sm:$0xff] %v1782
      %1815 = vst [vmem:[%s193 + $0x60] sm:$0xff] %v1783
      %1816 = vst [vmem:[%s193 + $0x68] sm:$0xff] %v1784
      %1817 = vst [vmem:[%s193 + $0x70] sm:$0xff] %v1785
      %1818 = vst [vmem:[%s193 + $0x78] sm:$0xff] %v1786
      %1819 = vst [vmem:[%s193 + $0x80] sm:$0xff] %v1787
      %1820 = vst [vmem:[%s193 + $0x88] sm:$0xff] %v1788
      %1821 = vst [vmem:[%s193 + $0x90] sm:$0xff] %v1789
      %1822 = vst [vmem:[%s193 + $0x98] sm:$0xff] %v1790
      %1823 = vst [vmem:[%s193 + $0xa0] sm:$0xff] %v1791
      %1824 = vst [vmem:[%s193 + $0xa8] sm:$0xff] %v1792
      %1825 = vst [vmem:[%s193 + $0xb0] sm:$0xff] %v1793
      %1826 = vst [vmem:[%s193 + $0xb8] sm:$0xff] %v1794
      %1827 = vst [vmem:[%s193 + $0xc0] sm:$0xff] %v1795
      %1828 = vst [vmem:[%s193 + $0xc8] sm:$0xff] %v1796
      %1829 = vst [vmem:[%s193 + $0xd0] sm:$0xff] %v1797
      %1830 = vst [vmem:[%s193 + $0xd8] sm:$0xff] %v1798
      %1831 = vst [vmem:[%s193 + $0xe0] sm:$0xff] %v1799
      %1832 = vst [vmem:[%s193 + $0xe8] sm:$0xff] %v1800
      %1833 = vst [vmem:[%s193 + $0xf0] sm:$0xff] %v1801
      %1834 = vst [vmem:[%s193 + $0xf8] sm:$0xff] %v1802
      %s1835 = smul.u32 2, %s20
      %p1836 = scmp.lt.s32.totalorder %s19, 1
      %s1837 = scalar_select %p1836, %s19, 1
      %p1838 = scmp.lt.s32.totalorder %s1835, 1
      %s1839 = scalar_select %p1838, %s1835, 1
      %s1840 = smul.addr %s1837, 32
      %s1841 = sadd.s32 %s1839, %s1840
      %s1842 = smul.addr %s1841, 8
      %s1843 = scalar_lea.vmem %s3, %s1842
      // Predicated region
      $region33: #{single_positional_semantic_embedding.1} parent=31 // pred_check
        %p1844 = pneg %p115
      $region34: #{single_positional_semantic_embedding.1} parent=31 // pred_check_branch
        %1846 = sbr.rel (%p1844) target = $region36
      $region35: #{single_positional_semantic_embedding.1} parent=31 // pred_region
        %s1847 = smul.u32 2, %s20
      $region36: #{single_positional_semantic_embedding.1} parent=31 // pred_fallthru
        _
    $region32: #{single_positional_semantic_embedding.1} parent=5 // pred_fallthru
      _
    %p1848 = scmp.le.s32.totalorder 2, %s10
    // Predicated region
    $region37: #{single_positional_semantic_embedding.1} parent=5 // pred_check
      %p1849 = pneg %p1848
    $region38: #{single_positional_semantic_embedding.1} parent=5 // pred_check_branch
      %1851 = sbr.rel (%p1849) target = $region40
    $region39: #{single_positional_semantic_embedding.1} parent=5 // pred_region
      %s1852 = ssub.s32 %s10, 2
      // Predicated region
      $region41: #{single_positional_semantic_embedding.1} parent=39 // pred_check
        %p1853 = pneg %p121
      $region42: #{single_positional_semantic_embedding.1} parent=39 // pred_check_branch
        %1855 = sbr.rel (%p1853) target = $region44
      $region43: #{single_positional_semantic_embedding.1} parent=39 // pred_region
        %s1856 = smul.u32 2, %s22
        %p1857 = scmp.lt.s32.totalorder %s21, 1
        %s1858 = scalar_select %p1857, %s21, 1
        %p1859 = scmp.lt.s32.totalorder %s1856, 1
        %s1860 = scalar_select %p1859, %s1856, 1
        %s1861 = smul.addr %s1858, 32
        %s1862 = sadd.s32 %s1860, %s1861
        %s1863 = smul.addr %s1862, 8
        %s1864 = scalar_lea.vmem %s3, %s1863
      $region44: #{single_positional_semantic_embedding.1} parent=39 // pred_fallthru
        _
    $region40: #{single_positional_semantic_embedding.1} parent=5 // pred_fallthru
      _
  $region6: #{single_positional_semantic_embedding.1} parent=0 // loop_footer
    %s14 = sadd.s32 1, %s10
  $region7: #{single_positional_semantic_embedding.1} parent=0 // loop_footer_branch
    %9 = sbr.rel target = $region3
  $region8: #{single_positional_semantic_embedding.1} parent=0 // loop_exit
    _

</llo_original>
